<compile_context>
chip_gen: v5e
topology: v5e:2x2
jax: 0.10.0
libtpu: 0.0.40
codegen_flags: <defaults>
</compile_context>

<pallas_src>
import functools

import jax
import jax.numpy as jnp
from jax.experimental import pallas as pl
from jax.experimental.pallas import tpu as pltpu

# encoder: 784 -> 128 -> 64 -> 12 -> 3   (ReLU between, none on latent)
# decoder: 3 -> 12 -> 64 -> 128 -> 784   (ReLU between, Sigmoid on output)
LAYER_DIMS = [784, 128, 64, 12, 3, 12, 64, 128, 784]
F_IN = LAYER_DIMS[0]          # 784
N_LAYERS = len(LAYER_DIMS) - 1


def _round_up(x, m):
    return ((x + m - 1) // m) * m


def _ae_kernel(x_ref, *refs):
    """refs = (w1, b1, ..., w8, b8, o_ref). Weights bf16 (in,out); biases f32 (1,out)."""
    o_ref = refs[-1]
    wb = refs[:-1]

    h = x_ref[...]                      # bf16 (tb, 784)
    n_layers = len(wb) // 2             # 8
    for li in range(n_layers):
        w = wb[2 * li][...]             # bf16
        b = wb[2 * li + 1][...]         # f32
        # bf16 x bf16 -> f32 accumulation on the MXU; elementwise math stays f32.
        # (.astype is a no-op for the first layer, whose input is already bf16.)
        h = jnp.dot(h.astype(jnp.bfloat16), w,
                    preferred_element_type=jnp.float32) + b
        if li < 3 or (4 <= li < 7):
            h = jnp.maximum(h, 0.0)          # ReLU on hidden layers
        elif li == n_layers - 1:
            h = jax.nn.sigmoid(h)            # Sigmoid on final decoder output
        # li == 3 -> latent layer, no activation
    o_ref[...] = h.astype(o_ref.dtype)


def prepare_params(params):
    """Cast weights to bf16 (MXU inputs); keep biases f32. Call ONCE outside jit."""
    prepared = []
    for li in range(len(params) // 2):
        prepared.append(params[2 * li].astype(jnp.bfloat16))
        prepared.append(params[2 * li + 1].astype(jnp.float32))
    return tuple(prepared)


@functools.partial(jax.jit, static_argnames=("tb",))
def _forward_impl(x, prepared, *, tb):
    B, F = x.shape
    assert F == F_IN

    # Row-only padding of the batch (no lane remapping); sliced off at the end.
    B_pad = _round_up(max(B, 1), tb)
    x_b = x.astype(jnp.bfloat16)
    if B_pad != B:
        x_b = jnp.zeros((B_pad, F_IN), jnp.bfloat16).at[:B, :].set(x_b)

    grid = (B_pad // tb,)

    # Block last dim equals the full array dim (784) -> satisfies the (8,128) rule
    # without any lane padding of the input/output or of W1 / W8 / b8.
    x_spec = pl.BlockSpec((tb, F_IN), lambda i: (i, 0))
    out_spec = pl.BlockSpec((tb, F_IN), lambda i: (i, 0))
    # Weights/biases: one full-array block, constant index across the grid
    # (bind ndim as a default arg -> no late-binding-closure bug).
    param_specs = [
        pl.BlockSpec(p.shape, lambda i, _nd=p.ndim: (0,) * _nd) for p in prepared
    ]

    macs = sum(prepared[2 * li].shape[0] * prepared[2 * li].shape[1]
               for li in range(len(prepared) // 2))
    param_bytes = sum(int(p.size) * p.dtype.itemsize for p in prepared)
    cost = pl.CostEstimate(
        flops=2 * macs * B_pad,
        transcendentals=B_pad * F_IN,                      # sigmoid on output tile
        bytes_accessed=B_pad * F_IN * (2 + 4) + param_bytes,  # bf16 in + f32 out
    )

    out = pl.pallas_call(
        _ae_kernel,
        out_shape=jax.ShapeDtypeStruct((B_pad, F_IN), jnp.float32),
        grid_spec=pltpu.PrefetchScalarGridSpec(
            num_scalar_prefetch=0,
            grid=grid,
            in_specs=[x_spec] + param_specs,
            out_specs=out_spec,
        ),
        compiler_params=pltpu.CompilerParams(
            dimension_semantics=("parallel",),   # batch tiles shard across TCs (v7x)
        ),
        cost_estimate=cost,
    )(x_b, *prepared)

    return out[:B]


def autoencoder_forward(x, prepared_params, *, max_tb=512):
    """x: (B, 784) float32. prepared_params: output of prepare_params(params)."""
    B = x.shape[0]
    # Adaptive batch tile: as large as possible (<= max_tb) while keeping the
    # grid >= 2 steps whenever B allows it, rows a multiple of 8.
    tb = min(max_tb, _round_up(max((B + 1) // 2, 1), 8))
    return _forward_impl(x, tuple(prepared_params), tb=tb)


def init_params(key):
    """Deterministic init mimicking PyTorch Linear default U(-1/sqrt(fan_in), +)."""
    params = []
    for li in range(N_LAYERS):
        fan_in, fan_out = LAYER_DIMS[li], LAYER_DIMS[li + 1]
        key, kw, kb = jax.random.split(key, 3)
        bound = 1.0 / jnp.sqrt(fan_in)
        # stored as (in, out): transpose of PyTorch's (out, in)
        w = jax.random.uniform(kw, (fan_in, fan_out), jnp.float32, -bound, bound)
        b = jax.random.uniform(kb, (1, fan_out), jnp.float32, -bound, bound)
        params += [w, b]
    return params


def reference_forward_f32(x, params):
    """Pure-f32 reference (PyTorch semantics)."""
    h = x
    n = len(params) // 2
    for li in range(n):
        h = h @ params[2 * li] + params[2 * li + 1]
        if li < 3 or (4 <= li < 7):
            h = jnp.maximum(h, 0.0)
        elif li == n - 1:
            h = jax.nn.sigmoid(h)
    return h


def reference_forward_bf16(x, params):
    """Reference with the same bf16-matmul / f32-elementwise recipe as the kernel."""
    prepared = prepare_params(params)
    h = x.astype(jnp.bfloat16)
    n = len(prepared) // 2
    for li in range(n):
        w, b = prepared[2 * li], prepared[2 * li + 1]
        h = jnp.dot(h.astype(jnp.bfloat16), w,
                    preferred_element_type=jnp.float32) + b
        if li < 3 or (4 <= li < 7):
            h = jnp.maximum(h, 0.0)
        elif li == n - 1:
            h = jax.nn.sigmoid(h)
    return h


if __name__ == "__main__":
    key = jax.random.PRNGKey(0)
    kp, kx = jax.random.split(key)

    params = init_params(kp)
    prepared = prepare_params(params)   # hoisted: cast weights to bf16 once

    # B=60: small, not a multiple of the tile (exercises row padding), and the
    # adaptive tile (32 rows) still gives a 2-step "parallel" grid.
    B = 60
    x = jax.random.uniform(kx, (B, F_IN), jnp.float32)

    out = autoencoder_forward(x, prepared)
    out = jax.block_until_ready(out)
    assert out.shape == (B, F_IN), out.shape

    # Tight check vs. a pure-JAX reference with identical bf16-matmul numerics.
    ref_bf16 = reference_forward_bf16(x, params)
    err_bf16 = float(jnp.max(jnp.abs(out - ref_bf16)))
    assert err_bf16 < 2e-3, err_bf16

    # Looser sanity check vs. the full-f32 reference (bf16 MXU inputs).
    ref_f32 = reference_forward_f32(x, params)
    err_f32 = float(jnp.max(jnp.abs(out - ref_f32)))
    assert err_f32 < 2e-2, err_f32

    print("KERNEL_OK")
</pallas_src>

<mosaic_0001>
module attributes {stable_mosaic.version = 11 : i64} {
  func.func @_ae_kernel(%arg0: i32, %arg1: memref<32x784xbf16, #tpu.memory_space<vmem>>, %arg2: memref<784x128xbf16, #tpu.memory_space<vmem>>, %arg3: memref<1x128xf32, #tpu.memory_space<vmem>>, %arg4: memref<128x64xbf16, #tpu.memory_space<vmem>>, %arg5: memref<1x64xf32, #tpu.memory_space<vmem>>, %arg6: memref<64x12xbf16, #tpu.memory_space<vmem>>, %arg7: memref<1x12xf32, #tpu.memory_space<vmem>>, %arg8: memref<12x3xbf16, #tpu.memory_space<vmem>>, %arg9: memref<1x3xf32, #tpu.memory_space<vmem>>, %arg10: memref<3x12xbf16, #tpu.memory_space<vmem>>, %arg11: memref<1x12xf32, #tpu.memory_space<vmem>>, %arg12: memref<12x64xbf16, #tpu.memory_space<vmem>>, %arg13: memref<1x64xf32, #tpu.memory_space<vmem>>, %arg14: memref<64x128xbf16, #tpu.memory_space<vmem>>, %arg15: memref<1x128xf32, #tpu.memory_space<vmem>>, %arg16: memref<128x784xbf16, #tpu.memory_space<vmem>>, %arg17: memref<1x784xf32, #tpu.memory_space<vmem>>, %arg18: memref<32x784xf32, #tpu.memory_space<vmem>>) attributes {dimension_semantics = [#tpu.dimension_semantics<parallel>], iteration_bounds = array<i64: 2>, scalar_prefetch = 0 : i64, scratch_operands = 0 : i64, tpu.core_type = #tpu.core_type<tc>, window_params = [{transform_indices = @transform_0, window_bounds = array<i64: 32, 784>}, {pipeline_mode = #tpu.pipeline_mode<synchronous>, transform_indices = @transform_1, window_bounds = array<i64: 784, 128>}, {pipeline_mode = #tpu.pipeline_mode<synchronous>, transform_indices = @transform_2, window_bounds = array<i64: 1, 128>}, {pipeline_mode = #tpu.pipeline_mode<synchronous>, transform_indices = @transform_3, window_bounds = array<i64: 128, 64>}, {pipeline_mode = #tpu.pipeline_mode<synchronous>, transform_indices = @transform_4, window_bounds = array<i64: 1, 64>}, {pipeline_mode = #tpu.pipeline_mode<synchronous>, transform_indices = @transform_5, window_bounds = array<i64: 64, 12>}, {pipeline_mode = #tpu.pipeline_mode<synchronous>, transform_indices = @transform_6, window_bounds = array<i64: 1, 12>}, {pipeline_mode = #tpu.pipeline_mode<synchronous>, transform_indices = @transform_7, window_bounds = array<i64: 12, 3>}, {pipeline_mode = #tpu.pipeline_mode<synchronous>, transform_indices = @transform_8, window_bounds = array<i64: 1, 3>}, {pipeline_mode = #tpu.pipeline_mode<synchronous>, transform_indices = @transform_9, window_bounds = array<i64: 3, 12>}, {pipeline_mode = #tpu.pipeline_mode<synchronous>, transform_indices = @transform_10, window_bounds = array<i64: 1, 12>}, {pipeline_mode = #tpu.pipeline_mode<synchronous>, transform_indices = @transform_11, window_bounds = array<i64: 12, 64>}, {pipeline_mode = #tpu.pipeline_mode<synchronous>, transform_indices = @transform_12, window_bounds = array<i64: 1, 64>}, {pipeline_mode = #tpu.pipeline_mode<synchronous>, transform_indices = @transform_13, window_bounds = array<i64: 64, 128>}, {pipeline_mode = #tpu.pipeline_mode<synchronous>, transform_indices = @transform_14, window_bounds = array<i64: 1, 128>}, {pipeline_mode = #tpu.pipeline_mode<synchronous>, transform_indices = @transform_15, window_bounds = array<i64: 128, 784>}, {pipeline_mode = #tpu.pipeline_mode<synchronous>, transform_indices = @transform_16, window_bounds = array<i64: 1, 784>}, {transform_indices = @transform_17, window_bounds = array<i64: 32, 784>}]} {
    %c0 = arith.constant 0 : index
    %c0_0 = arith.constant 0 : index
    %0 = vector.load %arg1[%c0, %c0_0] : memref<32x784xbf16, #tpu.memory_space<vmem>>, vector<32x784xbf16>
    %c0_1 = arith.constant 0 : index
    %c0_2 = arith.constant 0 : index
    %1 = vector.load %arg2[%c0_1, %c0_2] : memref<784x128xbf16, #tpu.memory_space<vmem>>, vector<784x128xbf16>
    %c0_3 = arith.constant 0 : index
    %c0_4 = arith.constant 0 : index
    %2 = vector.load %arg3[%c0_3, %c0_4] : memref<1x128xf32, #tpu.memory_space<vmem>>, vector<1x128xf32>
    %cst = arith.constant dense<0.000000e+00> : vector<32x128xf32>
    %3 = tpu.matmul %0, %1, %cst {dimension_numbers = #tpu.dot_dimension_numbers<[1], [0], [0], [1], [0, 0, 1, 1], [], []>} : vector<32x784xbf16>, vector<784x128xbf16>, vector<32x128xf32> -> vector<32x128xf32>
    %4 = vector.broadcast %2 : vector<1x128xf32> to vector<32x128xf32>
    %5 = arith.addf %3, %4 : vector<32x128xf32>
    %cst_5 = arith.constant 0.000000e+00 : f32
    %6 = vector.broadcast %cst_5 : f32 to vector<32x128xf32>
    %7 = arith.maximumf %5, %6 : vector<32x128xf32>
    %c0_6 = arith.constant 0 : index
    %c0_7 = arith.constant 0 : index
    %8 = vector.load %arg4[%c0_6, %c0_7] : memref<128x64xbf16, #tpu.memory_space<vmem>>, vector<128x64xbf16>
    %c0_8 = arith.constant 0 : index
    %c0_9 = arith.constant 0 : index
    %9 = vector.load %arg5[%c0_8, %c0_9] : memref<1x64xf32, #tpu.memory_space<vmem>>, vector<1x64xf32>
    %10 = arith.truncf %7 : vector<32x128xf32> to vector<32x128xbf16>
    %cst_10 = arith.constant dense<0.000000e+00> : vector<32x64xf32>
    %11 = tpu.matmul %10, %8, %cst_10 {dimension_numbers = #tpu.dot_dimension_numbers<[1], [0], [0], [1], [0, 0, 1, 1], [], []>} : vector<32x128xbf16>, vector<128x64xbf16>, vector<32x64xf32> -> vector<32x64xf32>
    %12 = vector.broadcast %9 : vector<1x64xf32> to vector<32x64xf32>
    %13 = arith.addf %11, %12 : vector<32x64xf32>
    %cst_11 = arith.constant 0.000000e+00 : f32
    %14 = vector.broadcast %cst_11 : f32 to vector<32x64xf32>
    %15 = arith.maximumf %13, %14 : vector<32x64xf32>
    %c0_12 = arith.constant 0 : index
    %c0_13 = arith.constant 0 : index
    %16 = vector.load %arg6[%c0_12, %c0_13] : memref<64x12xbf16, #tpu.memory_space<vmem>>, vector<64x12xbf16>
    %c0_14 = arith.constant 0 : index
    %c0_15 = arith.constant 0 : index
    %17 = vector.load %arg7[%c0_14, %c0_15] : memref<1x12xf32, #tpu.memory_space<vmem>>, vector<1x12xf32>
    %18 = arith.truncf %15 : vector<32x64xf32> to vector<32x64xbf16>
    %cst_16 = arith.constant dense<0.000000e+00> : vector<32x12xf32>
    %19 = tpu.matmul %18, %16, %cst_16 {dimension_numbers = #tpu.dot_dimension_numbers<[1], [0], [0], [1], [0, 0, 1, 1], [], []>} : vector<32x64xbf16>, vector<64x12xbf16>, vector<32x12xf32> -> vector<32x12xf32>
    %20 = vector.broadcast %17 : vector<1x12xf32> to vector<32x12xf32>
    %21 = arith.addf %19, %20 : vector<32x12xf32>
    %cst_17 = arith.constant 0.000000e+00 : f32
    %22 = vector.broadcast %cst_17 : f32 to vector<32x12xf32>
    %23 = arith.maximumf %21, %22 : vector<32x12xf32>
    %c0_18 = arith.constant 0 : index
    %c0_19 = arith.constant 0 : index
    %24 = vector.load %arg8[%c0_18, %c0_19] : memref<12x3xbf16, #tpu.memory_space<vmem>>, vector<12x3xbf16>
    %c0_20 = arith.constant 0 : index
    %c0_21 = arith.constant 0 : index
    %25 = vector.load %arg9[%c0_20, %c0_21] : memref<1x3xf32, #tpu.memory_space<vmem>>, vector<1x3xf32>
    %26 = arith.truncf %23 : vector<32x12xf32> to vector<32x12xbf16>
    %cst_22 = arith.constant dense<0.000000e+00> : vector<32x3xf32>
    %27 = tpu.matmul %26, %24, %cst_22 {dimension_numbers = #tpu.dot_dimension_numbers<[1], [0], [0], [1], [0, 0, 1, 1], [], []>} : vector<32x12xbf16>, vector<12x3xbf16>, vector<32x3xf32> -> vector<32x3xf32>
    %28 = vector.broadcast %25 : vector<1x3xf32> to vector<32x3xf32>
    %29 = arith.addf %27, %28 : vector<32x3xf32>
    %c0_23 = arith.constant 0 : index
    %c0_24 = arith.constant 0 : index
    %30 = vector.load %arg10[%c0_23, %c0_24] : memref<3x12xbf16, #tpu.memory_space<vmem>>, vector<3x12xbf16>
    %c0_25 = arith.constant 0 : index
    %c0_26 = arith.constant 0 : index
    %31 = vector.load %arg11[%c0_25, %c0_26] : memref<1x12xf32, #tpu.memory_space<vmem>>, vector<1x12xf32>
    %32 = arith.truncf %29 : vector<32x3xf32> to vector<32x3xbf16>
    %cst_27 = arith.constant dense<0.000000e+00> : vector<32x12xf32>
    %33 = tpu.matmul %32, %30, %cst_27 {dimension_numbers = #tpu.dot_dimension_numbers<[1], [0], [0], [1], [0, 0, 1, 1], [], []>} : vector<32x3xbf16>, vector<3x12xbf16>, vector<32x12xf32> -> vector<32x12xf32>
    %34 = vector.broadcast %31 : vector<1x12xf32> to vector<32x12xf32>
    %35 = arith.addf %33, %34 : vector<32x12xf32>
    %cst_28 = arith.constant 0.000000e+00 : f32
    %36 = vector.broadcast %cst_28 : f32 to vector<32x12xf32>
    %37 = arith.maximumf %35, %36 : vector<32x12xf32>
    %c0_29 = arith.constant 0 : index
    %c0_30 = arith.constant 0 : index
    %38 = vector.load %arg12[%c0_29, %c0_30] : memref<12x64xbf16, #tpu.memory_space<vmem>>, vector<12x64xbf16>
    %c0_31 = arith.constant 0 : index
    %c0_32 = arith.constant 0 : index
    %39 = vector.load %arg13[%c0_31, %c0_32] : memref<1x64xf32, #tpu.memory_space<vmem>>, vector<1x64xf32>
    %40 = arith.truncf %37 : vector<32x12xf32> to vector<32x12xbf16>
    %cst_33 = arith.constant dense<0.000000e+00> : vector<32x64xf32>
    %41 = tpu.matmul %40, %38, %cst_33 {dimension_numbers = #tpu.dot_dimension_numbers<[1], [0], [0], [1], [0, 0, 1, 1], [], []>} : vector<32x12xbf16>, vector<12x64xbf16>, vector<32x64xf32> -> vector<32x64xf32>
    %42 = vector.broadcast %39 : vector<1x64xf32> to vector<32x64xf32>
    %43 = arith.addf %41, %42 : vector<32x64xf32>
    %cst_34 = arith.constant 0.000000e+00 : f32
    %44 = vector.broadcast %cst_34 : f32 to vector<32x64xf32>
    %45 = arith.maximumf %43, %44 : vector<32x64xf32>
    %c0_35 = arith.constant 0 : index
    %c0_36 = arith.constant 0 : index
    %46 = vector.load %arg14[%c0_35, %c0_36] : memref<64x128xbf16, #tpu.memory_space<vmem>>, vector<64x128xbf16>
    %c0_37 = arith.constant 0 : index
    %c0_38 = arith.constant 0 : index
    %47 = vector.load %arg15[%c0_37, %c0_38] : memref<1x128xf32, #tpu.memory_space<vmem>>, vector<1x128xf32>
    %48 = arith.truncf %45 : vector<32x64xf32> to vector<32x64xbf16>
    %cst_39 = arith.constant dense<0.000000e+00> : vector<32x128xf32>
    %49 = tpu.matmul %48, %46, %cst_39 {dimension_numbers = #tpu.dot_dimension_numbers<[1], [0], [0], [1], [0, 0, 1, 1], [], []>} : vector<32x64xbf16>, vector<64x128xbf16>, vector<32x128xf32> -> vector<32x128xf32>
    %50 = vector.broadcast %47 : vector<1x128xf32> to vector<32x128xf32>
    %51 = arith.addf %49, %50 : vector<32x128xf32>
    %cst_40 = arith.constant 0.000000e+00 : f32
    %52 = vector.broadcast %cst_40 : f32 to vector<32x128xf32>
    %53 = arith.maximumf %51, %52 : vector<32x128xf32>
    %c0_41 = arith.constant 0 : index
    %c0_42 = arith.constant 0 : index
    %54 = vector.load %arg16[%c0_41, %c0_42] : memref<128x784xbf16, #tpu.memory_space<vmem>>, vector<128x784xbf16>
    %c0_43 = arith.constant 0 : index
    %c0_44 = arith.constant 0 : index
    %55 = vector.load %arg17[%c0_43, %c0_44] : memref<1x784xf32, #tpu.memory_space<vmem>>, vector<1x784xf32>
    %56 = arith.truncf %53 : vector<32x128xf32> to vector<32x128xbf16>
    %cst_45 = arith.constant dense<0.000000e+00> : vector<32x784xf32>
    %57 = tpu.matmul %56, %54, %cst_45 {dimension_numbers = #tpu.dot_dimension_numbers<[1], [0], [0], [1], [0, 0, 1, 1], [], []>} : vector<32x128xbf16>, vector<128x784xbf16>, vector<32x784xf32> -> vector<32x784xf32>
    %58 = vector.broadcast %55 : vector<1x784xf32> to vector<32x784xf32>
    %59 = arith.addf %57, %58 : vector<32x784xf32>
    %60 = arith.negf %59 : vector<32x784xf32>
    %61 = math.exp %60 : vector<32x784xf32>
    %cst_46 = arith.constant 1.000000e+00 : f32
    %62 = vector.broadcast %cst_46 : f32 to vector<32x784xf32>
    %63 = arith.addf %62, %61 : vector<32x784xf32>
    %64 = arith.divf %62, %63 : vector<32x784xf32>
    %c0_47 = arith.constant 0 : index
    %c0_48 = arith.constant 0 : index
    %65 = vector.load %arg18[%c0_47, %c0_48] : memref<32x784xf32, #tpu.memory_space<vmem>>, vector<32x784xf32>
    tpu.vector_store %arg18[%c0_47, %c0_48], %64 {strides = array<i32>} : memref<32x784xf32, #tpu.memory_space<vmem>>, vector<32x784xf32>,
    return
  }
  func.func @transform_0(%arg0: i32) -> (i32, i32) {
    %c0_i32 = arith.constant 0 : i32
    %c0_i32_0 = arith.constant 0 : i32
    return %arg0, %c0_i32 : i32, i32
  }
  func.func @transform_1(%arg0: i32) -> (i32, i32) {
    %c0_i32 = arith.constant 0 : i32
    %c0_i32_0 = arith.constant 0 : i32
    %c0_i32_1 = arith.constant 0 : i32
    return %c0_i32, %c0_i32_0 : i32, i32
  }
  func.func @transform_2(%arg0: i32) -> (i32, i32) {
    %c0_i32 = arith.constant 0 : i32
    %c0_i32_0 = arith.constant 0 : i32
    %c0_i32_1 = arith.constant 0 : i32
    return %c0_i32, %c0_i32_0 : i32, i32
  }
  func.func @transform_3(%arg0: i32) -> (i32, i32) {
    %c0_i32 = arith.constant 0 : i32
    %c0_i32_0 = arith.constant 0 : i32
    %c0_i32_1 = arith.constant 0 : i32
    return %c0_i32, %c0_i32_0 : i32, i32
  }
  func.func @transform_4(%arg0: i32) -> (i32, i32) {
    %c0_i32 = arith.constant 0 : i32
    %c0_i32_0 = arith.constant 0 : i32
    %c0_i32_1 = arith.constant 0 : i32
    return %c0_i32, %c0_i32_0 : i32, i32
  }
  func.func @transform_5(%arg0: i32) -> (i32, i32) {
    %c0_i32 = arith.constant 0 : i32
    %c0_i32_0 = arith.constant 0 : i32
    %c0_i32_1 = arith.constant 0 : i32
    return %c0_i32, %c0_i32_0 : i32, i32
  }
  func.func @transform_6(%arg0: i32) -> (i32, i32) {
    %c0_i32 = arith.constant 0 : i32
    %c0_i32_0 = arith.constant 0 : i32
    %c0_i32_1 = arith.constant 0 : i32
    return %c0_i32, %c0_i32_0 : i32, i32
  }
  func.func @transform_7(%arg0: i32) -> (i32, i32) {
    %c0_i32 = arith.constant 0 : i32
    %c0_i32_0 = arith.constant 0 : i32
    %c0_i32_1 = arith.constant 0 : i32
    return %c0_i32, %c0_i32_0 : i32, i32
  }
  func.func @transform_8(%arg0: i32) -> (i32, i32) {
    %c0_i32 = arith.constant 0 : i32
    %c0_i32_0 = arith.constant 0 : i32
    %c0_i32_1 = arith.constant 0 : i32
    return %c0_i32, %c0_i32_0 : i32, i32
  }
  func.func @transform_9(%arg0: i32) -> (i32, i32) {
    %c0_i32 = arith.constant 0 : i32
    %c0_i32_0 = arith.constant 0 : i32
    %c0_i32_1 = arith.constant 0 : i32
    return %c0_i32, %c0_i32_0 : i32, i32
  }
  func.func @transform_10(%arg0: i32) -> (i32, i32) {
    %c0_i32 = arith.constant 0 : i32
    %c0_i32_0 = arith.constant 0 : i32
    %c0_i32_1 = arith.constant 0 : i32
    return %c0_i32, %c0_i32_0 : i32, i32
  }
  func.func @transform_11(%arg0: i32) -> (i32, i32) {
    %c0_i32 = arith.constant 0 : i32
    %c0_i32_0 = arith.constant 0 : i32
    %c0_i32_1 = arith.constant 0 : i32
    return %c0_i32, %c0_i32_0 : i32, i32
  }
  func.func @transform_12(%arg0: i32) -> (i32, i32) {
    %c0_i32 = arith.constant 0 : i32
    %c0_i32_0 = arith.constant 0 : i32
    %c0_i32_1 = arith.constant 0 : i32
    return %c0_i32, %c0_i32_0 : i32, i32
  }
  func.func @transform_13(%arg0: i32) -> (i32, i32) {
    %c0_i32 = arith.constant 0 : i32
    %c0_i32_0 = arith.constant 0 : i32
    %c0_i32_1 = arith.constant 0 : i32
    return %c0_i32, %c0_i32_0 : i32, i32
  }
  func.func @transform_14(%arg0: i32) -> (i32, i32) {
    %c0_i32 = arith.constant 0 : i32
    %c0_i32_0 = arith.constant 0 : i32
    %c0_i32_1 = arith.constant 0 : i32
    return %c0_i32, %c0_i32_0 : i32, i32
  }
  func.func @transform_15(%arg0: i32) -> (i32, i32) {
    %c0_i32 = arith.constant 0 : i32
    %c0_i32_0 = arith.constant 0 : i32
    %c0_i32_1 = arith.constant 0 : i32
    return %c0_i32, %c0_i32_0 : i32, i32
  }
  func.func @transform_16(%arg0: i32) -> (i32, i32) {
    %c0_i32 = arith.constant 0 : i32
    %c0_i32_0 = arith.constant 0 : i32
    %c0_i32_1 = arith.constant 0 : i32
    return %c0_i32, %c0_i32_0 : i32, i32
  }
  func.func @transform_17(%arg0: i32) -> (i32, i32) {
    %c0_i32 = arith.constant 0 : i32
    %c0_i32_0 = arith.constant 0 : i32
    return %arg0, %c0_i32 : i32, i32
  }
}

</mosaic_0001>

<llo_original>
// kernel: _forward_impl.1
$region0: #{_forward_impl.1}
  #allocation0 [shape = 'u32[]', space=smem, size = 0x4, offset = 0x4, fixed_abs, tag = 'smem constant byte address 0x4 - core index']
  #allocation1 [shape = 'u32[72,128]{1,0:T(1,128)}', space=vmem, size = 0x9000, scoped, tag = 'internal scratch']
  %s0 = inlined_call_operand.vmem [shape: bf16[64,784], index: 0, kind: input, shape index: {}]
  %s1 = inlined_call_operand.vmem [shape: bf16[784,128], index: 1, kind: input, shape index: {}]
  %s2 = inlined_call_operand.vmem [shape: f32[1,128], index: 2, kind: input, shape index: {}]
  %s3 = inlined_call_operand.vmem [shape: bf16[128,64], index: 3, kind: input, shape index: {}]
  %s4 = inlined_call_operand.vmem [shape: f32[1,64], index: 4, kind: input, shape index: {}]
  %s5 = inlined_call_operand.vmem [shape: bf16[64,12], index: 5, kind: input, shape index: {}]
  %s6 = inlined_call_operand.vmem [shape: f32[1,12], index: 6, kind: input, shape index: {}]
  %s7 = inlined_call_operand.vmem [shape: bf16[12,3], index: 7, kind: input, shape index: {}]
  %s8 = inlined_call_operand.vmem [shape: f32[1,3], index: 8, kind: input, shape index: {}]
  %s9 = inlined_call_operand.vmem [shape: bf16[3,12], index: 9, kind: input, shape index: {}]
  %s10 = inlined_call_operand.vmem [shape: f32[1,12], index: 10, kind: input, shape index: {}]
  %s11 = inlined_call_operand.vmem [shape: bf16[12,64], index: 11, kind: input, shape index: {}]
  %s12 = inlined_call_operand.vmem [shape: f32[1,64], index: 12, kind: input, shape index: {}]
  %s13 = inlined_call_operand.vmem [shape: bf16[64,128], index: 13, kind: input, shape index: {}]
  %s14 = inlined_call_operand.vmem [shape: f32[1,128], index: 14, kind: input, shape index: {}]
  %s15 = inlined_call_operand.vmem [shape: bf16[128,784], index: 15, kind: input, shape index: {}]
  %s16 = inlined_call_operand.vmem [shape: f32[1,784], index: 16, kind: input, shape index: {}]
  %s17 = inlined_call_operand.hbm [shape: f32[64,784], index: 17, kind: output, shape index: {}]
  %s18 = sld [smem:[#allocation0]]
  $region101: #{_forward_impl.1} parent=0
    _
  %s20 = ssub.s32 1, %s18
  %s21 = scalar_select 0, %s20, %s18
  $region1: #{_forward_impl.1} parent=0
    #allocation2 [shape = 'u8[229376]{0}', space=vmem, size = 0x38000, scoped, tag = 'output window, operand 0']
    #allocation3 [shape = 's32[2]{0}', space=sflag, size = 0x8, scoped, tag = 'scoped memory for _forward_impl.1']
    %22 = vsyncpa [#allocation3], 0
    %s23 = scalar_lea.sflag [#allocation3], 1
    %24 = vsyncpa %s23, 0
    loop: start=0, step=1, limit=4
    $region2: #{_forward_impl.1} parent=1 // loop_pre_header
      _
    $region3: #{_forward_impl.1} parent=1 // loop_header
      %s26 = sphi 0, %s30
      %p27 = scmp.ge.s32.totalorder %s26, 4
      %s36 = sphi 0, %s38
      %s39 = sphi 0, %s36
      %s40 = sphi 0, %s39
      %s56 = sphi 0, %s40
      %s60 = sphi 0, %s60
      %s62 = sphi 0, %s60
      %s63 = sphi 0, %s62
      %s77 = sphi 0, %s63
      %s81 = sphi 0, %s81
      %s83 = sphi 0, %s81
      %s84 = sphi 0, %s83
      %s98 = sphi 0, %s84
      %s102 = sphi 0, %s102
      %s104 = sphi 0, %s102
      %s105 = sphi 0, %s104
      %s119 = sphi 0, %s105
      %s123 = sphi 0, %s123
      %s125 = sphi 0, %s123
      %s126 = sphi 0, %s125
      %s140 = sphi 0, %s126
      %s144 = sphi 0, %s144
      %s146 = sphi 0, %s144
      %s147 = sphi 0, %s146
      %s161 = sphi 0, %s147
      %s165 = sphi 0, %s165
      %s167 = sphi 0, %s165
      %s168 = sphi 0, %s167
      %s182 = sphi 0, %s168
      %s186 = sphi 0, %s186
      %s188 = sphi 0, %s186
      %s189 = sphi 0, %s188
      %s203 = sphi 0, %s189
      %s207 = sphi 0, %s207
      %s209 = sphi 0, %s207
      %s210 = sphi 0, %s209
      %s224 = sphi 0, %s210
      %s228 = sphi 0, %s228
      %s230 = sphi 0, %s228
      %s231 = sphi 0, %s230
      %s245 = sphi 0, %s231
      %s249 = sphi 0, %s249
      %s251 = sphi 0, %s249
      %s252 = sphi 0, %s251
      %s266 = sphi 0, %s252
      %s270 = sphi 0, %s270
      %s272 = sphi 0, %s270
      %s273 = sphi 0, %s272
      %s287 = sphi 0, %s273
      %s291 = sphi 0, %s291
      %s293 = sphi 0, %s291
      %s294 = sphi 0, %s293
      %s308 = sphi 0, %s294
      %s312 = sphi 0, %s312
      %s314 = sphi 0, %s312
      %s315 = sphi 0, %s314
      %s329 = sphi 0, %s315
      %s333 = sphi 0, %s333
      %s335 = sphi 0, %s333
      %s336 = sphi 0, %s335
      %s350 = sphi 0, %s336
      %s354 = sphi 0, %s354
      %s356 = sphi 0, %s354
      %s357 = sphi 0, %s356
      %s371 = sphi 0, %s357
      %s375 = sphi 0, %s375
      %s377 = sphi 0, %s375
      %s378 = sphi 0, %s377
      %s392 = sphi 0, %s378
      %s398 = sphi 0, %s400
      %s401 = sphi 0, %s398
      %s402 = sphi 0, %s401
      %s418 = sphi 0, %s402
    $region4: #{_forward_impl.1} parent=1 // loop_header_branch
      %29 = sbr.rel (%p27) target = $region8
    $region5: #{_forward_impl.1} parent=1 // loop_body
      %s31 = ssub.s32 %s26, 1
      %s32 = ssub.s32 %s26, 2
      %s33 = sadd.s32 %s26, 1
      %s34 = ssub.s32 %s26, %s33
      %p35 = scmp.eq.s32.totalorder %s34, 0
      %s37 = sadd.s32 %s36, 1
      %s38 = scalar_select %p35, %s36, %s37
      %p41 = pneg %p35
      %p42 = scmp.eq.s32.totalorder %s26, 1
      %p43 = por %p41, %p42
      %p44 = scmp.ne.s32.totalorder %s36, %s39
      %p45 = scmp.eq.s32.totalorder %s26, 0
      %p46 = por %p44, %p45
      %p47 = scmp.ne.s32.totalorder %s36, %s39
      %p48 = scmp.eq.s32.totalorder %s31, 1
      %p49 = por %p47, %p48
      %p50 = scmp.ne.s32.totalorder %s39, %s40
      %p51 = scmp.eq.s32.totalorder %s31, 0
      %p52 = por %p50, %p51
      %p53 = scmp.ne.s32.totalorder %s39, %s40
      %p54 = scmp.eq.s32.totalorder %s32, 1
      %p55 = por %p53, %p54
      %p57 = scmp.ne.s32.totalorder %s40, %s56
      %p58 = scmp.eq.s32.totalorder %s32, 0
      %p59 = por %p57, %p58
      %s61 = sadd.s32 %s60, 1
      %p64 = scmp.eq.s32.totalorder %s26, 1
      %p65 = scmp.ne.s32.totalorder %s60, %s62
      %p66 = scmp.eq.s32.totalorder %s26, 0
      %p67 = por %p65, %p66
      %p68 = scmp.ne.s32.totalorder %s60, %s62
      %p69 = scmp.eq.s32.totalorder %s31, 1
      %p70 = por %p68, %p69
      %p71 = scmp.ne.s32.totalorder %s62, %s63
      %p72 = scmp.eq.s32.totalorder %s31, 0
      %p73 = por %p71, %p72
      %p74 = scmp.ne.s32.totalorder %s62, %s63
      %p75 = scmp.eq.s32.totalorder %s32, 1
      %p76 = por %p74, %p75
      %p78 = scmp.ne.s32.totalorder %s63, %s77
      %p79 = scmp.eq.s32.totalorder %s32, 0
      %p80 = por %p78, %p79
      %s82 = sadd.s32 %s81, 1
      %p85 = scmp.eq.s32.totalorder %s26, 1
      %p86 = scmp.ne.s32.totalorder %s81, %s83
      %p87 = scmp.eq.s32.totalorder %s26, 0
      %p88 = por %p86, %p87
      %p89 = scmp.ne.s32.totalorder %s81, %s83
      %p90 = scmp.eq.s32.totalorder %s31, 1
      %p91 = por %p89, %p90
      %p92 = scmp.ne.s32.totalorder %s83, %s84
      %p93 = scmp.eq.s32.totalorder %s31, 0
      %p94 = por %p92, %p93
      %p95 = scmp.ne.s32.totalorder %s83, %s84
      %p96 = scmp.eq.s32.totalorder %s32, 1
      %p97 = por %p95, %p96
      %p99 = scmp.ne.s32.totalorder %s84, %s98
      %p100 = scmp.eq.s32.totalorder %s32, 0
      %p101 = por %p99, %p100
      %s103 = sadd.s32 %s102, 1
      %p106 = scmp.eq.s32.totalorder %s26, 1
      %p107 = scmp.ne.s32.totalorder %s102, %s104
      %p108 = scmp.eq.s32.totalorder %s26, 0
      %p109 = por %p107, %p108
      %p110 = scmp.ne.s32.totalorder %s102, %s104
      %p111 = scmp.eq.s32.totalorder %s31, 1
      %p112 = por %p110, %p111
      %p113 = scmp.ne.s32.totalorder %s104, %s105
      %p114 = scmp.eq.s32.totalorder %s31, 0
      %p115 = por %p113, %p114
      %p116 = scmp.ne.s32.totalorder %s104, %s105
      %p117 = scmp.eq.s32.totalorder %s32, 1
      %p118 = por %p116, %p117
      %p120 = scmp.ne.s32.totalorder %s105, %s119
      %p121 = scmp.eq.s32.totalorder %s32, 0
      %p122 = por %p120, %p121
      %s124 = sadd.s32 %s123, 1
      %p127 = scmp.eq.s32.totalorder %s26, 1
      %p128 = scmp.ne.s32.totalorder %s123, %s125
      %p129 = scmp.eq.s32.totalorder %s26, 0
      %p130 = por %p128, %p129
      %p131 = scmp.ne.s32.totalorder %s123, %s125
      %p132 = scmp.eq.s32.totalorder %s31, 1
      %p133 = por %p131, %p132
      %p134 = scmp.ne.s32.totalorder %s125, %s126
      %p135 = scmp.eq.s32.totalorder %s31, 0
      %p136 = por %p134, %p135
      %p137 = scmp.ne.s32.totalorder %s125, %s126
      %p138 = scmp.eq.s32.totalorder %s32, 1
      %p139 = por %p137, %p138
      %p141 = scmp.ne.s32.totalorder %s126, %s140
      %p142 = scmp.eq.s32.totalorder %s32, 0
      %p143 = por %p141, %p142
      %s145 = sadd.s32 %s144, 1
      %p148 = scmp.eq.s32.totalorder %s26, 1
      %p149 = scmp.ne.s32.totalorder %s144, %s146
      %p150 = scmp.eq.s32.totalorder %s26, 0
      %p151 = por %p149, %p150
      %p152 = scmp.ne.s32.totalorder %s144, %s146
      %p153 = scmp.eq.s32.totalorder %s31, 1
      %p154 = por %p152, %p153
      %p155 = scmp.ne.s32.totalorder %s146, %s147
      %p156 = scmp.eq.s32.totalorder %s31, 0
      %p157 = por %p155, %p156
      %p158 = scmp.ne.s32.totalorder %s146, %s147
      %p159 = scmp.eq.s32.totalorder %s32, 1
      %p160 = por %p158, %p159
      %p162 = scmp.ne.s32.totalorder %s147, %s161
      %p163 = scmp.eq.s32.totalorder %s32, 0
      %p164 = por %p162, %p163
      %s166 = sadd.s32 %s165, 1
      %p169 = scmp.eq.s32.totalorder %s26, 1
      %p170 = scmp.ne.s32.totalorder %s165, %s167
      %p171 = scmp.eq.s32.totalorder %s26, 0
      %p172 = por %p170, %p171
      %p173 = scmp.ne.s32.totalorder %s165, %s167
      %p174 = scmp.eq.s32.totalorder %s31, 1
      %p175 = por %p173, %p174
      %p176 = scmp.ne.s32.totalorder %s167, %s168
      %p177 = scmp.eq.s32.totalorder %s31, 0
      %p178 = por %p176, %p177
      %p179 = scmp.ne.s32.totalorder %s167, %s168
      %p180 = scmp.eq.s32.totalorder %s32, 1
      %p181 = por %p179, %p180
      %p183 = scmp.ne.s32.totalorder %s168, %s182
      %p184 = scmp.eq.s32.totalorder %s32, 0
      %p185 = por %p183, %p184
      %s187 = sadd.s32 %s186, 1
      %p190 = scmp.eq.s32.totalorder %s26, 1
      %p191 = scmp.ne.s32.totalorder %s186, %s188
      %p192 = scmp.eq.s32.totalorder %s26, 0
      %p193 = por %p191, %p192
      %p194 = scmp.ne.s32.totalorder %s186, %s188
      %p195 = scmp.eq.s32.totalorder %s31, 1
      %p196 = por %p194, %p195
      %p197 = scmp.ne.s32.totalorder %s188, %s189
      %p198 = scmp.eq.s32.totalorder %s31, 0
      %p199 = por %p197, %p198
      %p200 = scmp.ne.s32.totalorder %s188, %s189
      %p201 = scmp.eq.s32.totalorder %s32, 1
      %p202 = por %p200, %p201
      %p204 = scmp.ne.s32.totalorder %s189, %s203
      %p205 = scmp.eq.s32.totalorder %s32, 0
      %p206 = por %p204, %p205
      %s208 = sadd.s32 %s207, 1
      %p211 = scmp.eq.s32.totalorder %s26, 1
      %p212 = scmp.ne.s32.totalorder %s207, %s209
      %p213 = scmp.eq.s32.totalorder %s26, 0
      %p214 = por %p212, %p213
      %p215 = scmp.ne.s32.totalorder %s207, %s209
      %p216 = scmp.eq.s32.totalorder %s31, 1
      %p217 = por %p215, %p216
      %p218 = scmp.ne.s32.totalorder %s209, %s210
      %p219 = scmp.eq.s32.totalorder %s31, 0
      %p220 = por %p218, %p219
      %p221 = scmp.ne.s32.totalorder %s209, %s210
      %p222 = scmp.eq.s32.totalorder %s32, 1
      %p223 = por %p221, %p222
      %p225 = scmp.ne.s32.totalorder %s210, %s224
      %p226 = scmp.eq.s32.totalorder %s32, 0
      %p227 = por %p225, %p226
      %s229 = sadd.s32 %s228, 1
      %p232 = scmp.eq.s32.totalorder %s26, 1
      %p233 = scmp.ne.s32.totalorder %s228, %s230
      %p234 = scmp.eq.s32.totalorder %s26, 0
      %p235 = por %p233, %p234
      %p236 = scmp.ne.s32.totalorder %s228, %s230
      %p237 = scmp.eq.s32.totalorder %s31, 1
      %p238 = por %p236, %p237
      %p239 = scmp.ne.s32.totalorder %s230, %s231
      %p240 = scmp.eq.s32.totalorder %s31, 0
      %p241 = por %p239, %p240
      %p242 = scmp.ne.s32.totalorder %s230, %s231
      %p243 = scmp.eq.s32.totalorder %s32, 1
      %p244 = por %p242, %p243
      %p246 = scmp.ne.s32.totalorder %s231, %s245
      %p247 = scmp.eq.s32.totalorder %s32, 0
      %p248 = por %p246, %p247
      %s250 = sadd.s32 %s249, 1
      %p253 = scmp.eq.s32.totalorder %s26, 1
      %p254 = scmp.ne.s32.totalorder %s249, %s251
      %p255 = scmp.eq.s32.totalorder %s26, 0
      %p256 = por %p254, %p255
      %p257 = scmp.ne.s32.totalorder %s249, %s251
      %p258 = scmp.eq.s32.totalorder %s31, 1
      %p259 = por %p257, %p258
      %p260 = scmp.ne.s32.totalorder %s251, %s252
      %p261 = scmp.eq.s32.totalorder %s31, 0
      %p262 = por %p260, %p261
      %p263 = scmp.ne.s32.totalorder %s251, %s252
      %p264 = scmp.eq.s32.totalorder %s32, 1
      %p265 = por %p263, %p264
      %p267 = scmp.ne.s32.totalorder %s252, %s266
      %p268 = scmp.eq.s32.totalorder %s32, 0
      %p269 = por %p267, %p268
      %s271 = sadd.s32 %s270, 1
      %p274 = scmp.eq.s32.totalorder %s26, 1
      %p275 = scmp.ne.s32.totalorder %s270, %s272
      %p276 = scmp.eq.s32.totalorder %s26, 0
      %p277 = por %p275, %p276
      %p278 = scmp.ne.s32.totalorder %s270, %s272
      %p279 = scmp.eq.s32.totalorder %s31, 1
      %p280 = por %p278, %p279
      %p281 = scmp.ne.s32.totalorder %s272, %s273
      %p282 = scmp.eq.s32.totalorder %s31, 0
      %p283 = por %p281, %p282
      %p284 = scmp.ne.s32.totalorder %s272, %s273
      %p285 = scmp.eq.s32.totalorder %s32, 1
      %p286 = por %p284, %p285
      %p288 = scmp.ne.s32.totalorder %s273, %s287
      %p289 = scmp.eq.s32.totalorder %s32, 0
      %p290 = por %p288, %p289
      %s292 = sadd.s32 %s291, 1
      %p295 = scmp.eq.s32.totalorder %s26, 1
      %p296 = scmp.ne.s32.totalorder %s291, %s293
      %p297 = scmp.eq.s32.totalorder %s26, 0
      %p298 = por %p296, %p297
      %p299 = scmp.ne.s32.totalorder %s291, %s293
      %p300 = scmp.eq.s32.totalorder %s31, 1
      %p301 = por %p299, %p300
      %p302 = scmp.ne.s32.totalorder %s293, %s294
      %p303 = scmp.eq.s32.totalorder %s31, 0
      %p304 = por %p302, %p303
      %p305 = scmp.ne.s32.totalorder %s293, %s294
      %p306 = scmp.eq.s32.totalorder %s32, 1
      %p307 = por %p305, %p306
      %p309 = scmp.ne.s32.totalorder %s294, %s308
      %p310 = scmp.eq.s32.totalorder %s32, 0
      %p311 = por %p309, %p310
      %s313 = sadd.s32 %s312, 1
      %p316 = scmp.eq.s32.totalorder %s26, 1
      %p317 = scmp.ne.s32.totalorder %s312, %s314
      %p318 = scmp.eq.s32.totalorder %s26, 0
      %p319 = por %p317, %p318
      %p320 = scmp.ne.s32.totalorder %s312, %s314
      %p321 = scmp.eq.s32.totalorder %s31, 1
      %p322 = por %p320, %p321
      %p323 = scmp.ne.s32.totalorder %s314, %s315
      %p324 = scmp.eq.s32.totalorder %s31, 0
      %p325 = por %p323, %p324
      %p326 = scmp.ne.s32.totalorder %s314, %s315
      %p327 = scmp.eq.s32.totalorder %s32, 1
      %p328 = por %p326, %p327
      %p330 = scmp.ne.s32.totalorder %s315, %s329
      %p331 = scmp.eq.s32.totalorder %s32, 0
      %p332 = por %p330, %p331
      %s334 = sadd.s32 %s333, 1
      %p337 = scmp.eq.s32.totalorder %s26, 1
      %p338 = scmp.ne.s32.totalorder %s333, %s335
      %p339 = scmp.eq.s32.totalorder %s26, 0
      %p340 = por %p338, %p339
      %p341 = scmp.ne.s32.totalorder %s333, %s335
      %p342 = scmp.eq.s32.totalorder %s31, 1
      %p343 = por %p341, %p342
      %p344 = scmp.ne.s32.totalorder %s335, %s336
      %p345 = scmp.eq.s32.totalorder %s31, 0
      %p346 = por %p344, %p345
      %p347 = scmp.ne.s32.totalorder %s335, %s336
      %p348 = scmp.eq.s32.totalorder %s32, 1
      %p349 = por %p347, %p348
      %p351 = scmp.ne.s32.totalorder %s336, %s350
      %p352 = scmp.eq.s32.totalorder %s32, 0
      %p353 = por %p351, %p352
      %s355 = sadd.s32 %s354, 1
      %p358 = scmp.eq.s32.totalorder %s26, 1
      %p359 = scmp.ne.s32.totalorder %s354, %s356
      %p360 = scmp.eq.s32.totalorder %s26, 0
      %p361 = por %p359, %p360
      %p362 = scmp.ne.s32.totalorder %s354, %s356
      %p363 = scmp.eq.s32.totalorder %s31, 1
      %p364 = por %p362, %p363
      %p365 = scmp.ne.s32.totalorder %s356, %s357
      %p366 = scmp.eq.s32.totalorder %s31, 0
      %p367 = por %p365, %p366
      %p368 = scmp.ne.s32.totalorder %s356, %s357
      %p369 = scmp.eq.s32.totalorder %s32, 1
      %p370 = por %p368, %p369
      %p372 = scmp.ne.s32.totalorder %s357, %s371
      %p373 = scmp.eq.s32.totalorder %s32, 0
      %p374 = por %p372, %p373
      %s376 = sadd.s32 %s375, 1
      %p379 = scmp.eq.s32.totalorder %s26, 1
      %p380 = scmp.ne.s32.totalorder %s375, %s377
      %p381 = scmp.eq.s32.totalorder %s26, 0
      %p382 = por %p380, %p381
      %p383 = scmp.ne.s32.totalorder %s375, %s377
      %p384 = scmp.eq.s32.totalorder %s31, 1
      %p385 = por %p383, %p384
      %p386 = scmp.ne.s32.totalorder %s377, %s378
      %p387 = scmp.eq.s32.totalorder %s31, 0
      %p388 = por %p386, %p387
      %p389 = scmp.ne.s32.totalorder %s377, %s378
      %p390 = scmp.eq.s32.totalorder %s32, 1
      %p391 = por %p389, %p390
      %p393 = scmp.ne.s32.totalorder %s378, %s392
      %p394 = scmp.eq.s32.totalorder %s32, 0
      %p395 = por %p393, %p394
      %s396 = ssub.s32 %s26, %s33
      %p397 = scmp.eq.s32.totalorder %s396, 0
      %s399 = sadd.s32 %s398, 1
      %s400 = scalar_select %p397, %s398, %s399
      %p403 = pneg %p397
      %p404 = scmp.eq.s32.totalorder %s26, 1
      %p405 = por %p403, %p404
      %p406 = scmp.ne.s32.totalorder %s398, %s401
      %p407 = scmp.eq.s32.totalorder %s26, 0
      %p408 = por %p406, %p407
      %p409 = scmp.ne.s32.totalorder %s398, %s401
      %p410 = scmp.eq.s32.totalorder %s31, 1
      %p411 = por %p409, %p410
      %p412 = scmp.ne.s32.totalorder %s401, %s402
      %p413 = scmp.eq.s32.totalorder %s31, 0
      %p414 = por %p412, %p413
      %p415 = scmp.ne.s32.totalorder %s401, %s402
      %p416 = scmp.eq.s32.totalorder %s32, 1
      %p417 = por %p415, %p416
      %p419 = scmp.ne.s32.totalorder %s402, %s418
      %p420 = scmp.eq.s32.totalorder %s32, 0
      %p421 = por %p419, %p420
      %p422 = scmp.le.s32.totalorder 1, %s26
      %p423 = scmp.lt.s32.totalorder %s26, 3
      %p424 = pnand %p422, %p423
      %p425 = pneg %p424
      // Predicated region
      $region9: #{_forward_impl.1} parent=5 // pred_check
        _
      $region10: #{_forward_impl.1} parent=5 // pred_check_branch
        %427 = sbr.rel (%p424) target = $region12
      $region11: #{_forward_impl.1} parent=5 // pred_region
        %s428 = ssub.s32 %s26, 1
        // Predicated region
        $region13: #{_forward_impl.1} parent=11 // pred_check
          %p429 = pneg %p73
        $region14: #{_forward_impl.1} parent=11 // pred_check_branch
          %431 = sbr.rel (%p429) target = $region16
        $region15: #{_forward_impl.1} parent=11 // pred_region
          _
        $region16: #{_forward_impl.1} parent=11 // pred_fallthru
          _
        // Predicated region
        $region17: #{_forward_impl.1} parent=11 // pred_check
          %p432 = pneg %p94
        $region18: #{_forward_impl.1} parent=11 // pred_check_branch
          %434 = sbr.rel (%p432) target = $region20
        $region19: #{_forward_impl.1} parent=11 // pred_region
          _
        $region20: #{_forward_impl.1} parent=11 // pred_fallthru
          _
        // Predicated region
        $region21: #{_forward_impl.1} parent=11 // pred_check
          %p435 = pneg %p115
        $region22: #{_forward_impl.1} parent=11 // pred_check_branch
          %437 = sbr.rel (%p435) target = $region24
        $region23: #{_forward_impl.1} parent=11 // pred_region
          _
        $region24: #{_forward_impl.1} parent=11 // pred_fallthru
          _
        // Predicated region
        $region25: #{_forward_impl.1} parent=11 // pred_check
          %p438 = pneg %p136
        $region26: #{_forward_impl.1} parent=11 // pred_check_branch
          %440 = sbr.rel (%p438) target = $region28
        $region27: #{_forward_impl.1} parent=11 // pred_region
          _
        $region28: #{_forward_impl.1} parent=11 // pred_fallthru
          _
        // Predicated region
        $region29: #{_forward_impl.1} parent=11 // pred_check
          %p441 = pneg %p157
        $region30: #{_forward_impl.1} parent=11 // pred_check_branch
          %443 = sbr.rel (%p441) target = $region32
        $region31: #{_forward_impl.1} parent=11 // pred_region
          _
        $region32: #{_forward_impl.1} parent=11 // pred_fallthru
          _
        // Predicated region
        $region33: #{_forward_impl.1} parent=11 // pred_check
          %p444 = pneg %p178
        $region34: #{_forward_impl.1} parent=11 // pred_check_branch
          %446 = sbr.rel (%p444) target = $region36
        $region35: #{_forward_impl.1} parent=11 // pred_region
          _
        $region36: #{_forward_impl.1} parent=11 // pred_fallthru
          _
        // Predicated region
        $region37: #{_forward_impl.1} parent=11 // pred_check
          %p447 = pneg %p199
        $region38: #{_forward_impl.1} parent=11 // pred_check_branch
          %449 = sbr.rel (%p447) target = $region40
        $region39: #{_forward_impl.1} parent=11 // pred_region
          _
        $region40: #{_forward_impl.1} parent=11 // pred_fallthru
          _
        // Predicated region
        $region41: #{_forward_impl.1} parent=11 // pred_check
          %p450 = pneg %p220
        $region42: #{_forward_impl.1} parent=11 // pred_check_branch
          %452 = sbr.rel (%p450) target = $region44
        $region43: #{_forward_impl.1} parent=11 // pred_region
          _
        $region44: #{_forward_impl.1} parent=11 // pred_fallthru
          _
        // Predicated region
        $region45: #{_forward_impl.1} parent=11 // pred_check
          %p453 = pneg %p241
        $region46: #{_forward_impl.1} parent=11 // pred_check_branch
          %455 = sbr.rel (%p453) target = $region48
        $region47: #{_forward_impl.1} parent=11 // pred_region
          _
        $region48: #{_forward_impl.1} parent=11 // pred_fallthru
          _
        // Predicated region
        $region49: #{_forward_impl.1} parent=11 // pred_check
          %p456 = pneg %p262
        $region50: #{_forward_impl.1} parent=11 // pred_check_branch
          %458 = sbr.rel (%p456) target = $region52
        $region51: #{_forward_impl.1} parent=11 // pred_region
          _
        $region52: #{_forward_impl.1} parent=11 // pred_fallthru
          _
        // Predicated region
        $region53: #{_forward_impl.1} parent=11 // pred_check
          %p459 = pneg %p283
        $region54: #{_forward_impl.1} parent=11 // pred_check_branch
          %461 = sbr.rel (%p459) target = $region56
        $region55: #{_forward_impl.1} parent=11 // pred_region
          _
        $region56: #{_forward_impl.1} parent=11 // pred_fallthru
          _
        // Predicated region
        $region57: #{_forward_impl.1} parent=11 // pred_check
          %p462 = pneg %p304
        $region58: #{_forward_impl.1} parent=11 // pred_check_branch
          %464 = sbr.rel (%p462) target = $region60
        $region59: #{_forward_impl.1} parent=11 // pred_region
          _
        $region60: #{_forward_impl.1} parent=11 // pred_fallthru
          _
        // Predicated region
        $region61: #{_forward_impl.1} parent=11 // pred_check
          %p465 = pneg %p325
        $region62: #{_forward_impl.1} parent=11 // pred_check_branch
          %467 = sbr.rel (%p465) target = $region64
        $region63: #{_forward_impl.1} parent=11 // pred_region
          _
        $region64: #{_forward_impl.1} parent=11 // pred_fallthru
          _
        // Predicated region
        $region65: #{_forward_impl.1} parent=11 // pred_check
          %p468 = pneg %p346
        $region66: #{_forward_impl.1} parent=11 // pred_check_branch
          %470 = sbr.rel (%p468) target = $region68
        $region67: #{_forward_impl.1} parent=11 // pred_region
          _
        $region68: #{_forward_impl.1} parent=11 // pred_fallthru
          _
        // Predicated region
        $region69: #{_forward_impl.1} parent=11 // pred_check
          %p471 = pneg %p367
        $region70: #{_forward_impl.1} parent=11 // pred_check_branch
          %473 = sbr.rel (%p471) target = $region72
        $region71: #{_forward_impl.1} parent=11 // pred_region
          _
        $region72: #{_forward_impl.1} parent=11 // pred_fallthru
          _
        // Predicated region
        $region73: #{_forward_impl.1} parent=11 // pred_check
          %p474 = pneg %p388
        $region74: #{_forward_impl.1} parent=11 // pred_check_branch
          %476 = sbr.rel (%p474) target = $region76
        $region75: #{_forward_impl.1} parent=11 // pred_region
          _
        $region76: #{_forward_impl.1} parent=11 // pred_fallthru
          _
      $region12: #{_forward_impl.1} parent=5 // pred_fallthru
        _
      %p477 = scmp.lt.s32.totalorder %s26, 2
      // Predicated region
      $region77: #{_forward_impl.1} parent=5 // pred_check
        %p478 = pneg %p477
      $region78: #{_forward_impl.1} parent=5 // pred_check_branch
        %480 = sbr.rel (%p478) target = $region80
      $region79: #{_forward_impl.1} parent=5 // pred_region
        // Predicated region
        $region81: #{_forward_impl.1} parent=79 // pred_check
          %p481 = pneg %p46
        $region82: #{_forward_impl.1} parent=79 // pred_check_branch
          %483 = sbr.rel (%p481) target = $region84
        $region83: #{_forward_impl.1} parent=79 // pred_region
          %s484 = smul.u32 4, %s26
          %p485 = scmp.lt.s32.totalorder %s484, 7
          %s486 = scalar_select %p485, %s484, 7
          %s487 = smul.addr %s486, 7
          %s488 = smul.addr %s487, 4
          %s489 = scalar_lea.vmem %s0, %s488
          %s490 = smul.u32 4, %s26
        $region84: #{_forward_impl.1} parent=79 // pred_fallthru
          _
      $region80: #{_forward_impl.1} parent=5 // pred_fallthru
        _
      %p491 = scmp.le.s32.totalorder 1, %s26
      %p492 = scmp.lt.s32.totalorder %s26, 3
      %p493 = pnand %p491, %p492
      %p494 = pneg %p493
      // Predicated region
      $region85: #{_forward_impl.1} parent=5 // pred_check
        _
      $region86: #{_forward_impl.1} parent=5 // pred_check_branch
        %496 = sbr.rel (%p493) target = $region88
      $region87: #{_forward_impl.1} parent=5 // pred_region
        %s497 = ssub.s32 %s26, 1
        %s498 = smul.u32 4, %s31
        %p499 = scmp.lt.s32.totalorder %s498, 7
        %s500 = scalar_select %p499, %s498, 7
        %s501 = smul.addr %s500, 7
        %s502 = smul.addr %s501, 4
        %s503 = scalar_lea.vmem %s0, %s502
        %p504 = pneg %p52
        %p505 = pneg %p49
        %p506 = pneg %p73
        %p507 = pneg %p70
        %p508 = pneg %p94
        %p509 = pneg %p91
        %p510 = pneg %p115
        %p511 = pneg %p112
        %p512 = pneg %p136
        %p513 = pneg %p133
        %p514 = pneg %p157
        %p515 = pneg %p154
        %p516 = pneg %p178
        %p517 = pneg %p175
        %p518 = pneg %p199
        %p519 = pneg %p196
        %p520 = pneg %p220
        %p521 = pneg %p217
        %p522 = pneg %p241
        %p523 = pneg %p238
        %p524 = pneg %p262
        %p525 = pneg %p259
        %p526 = pneg %p283
        %p527 = pneg %p280
        %p528 = pneg %p304
        %p529 = pneg %p301
        %p530 = pneg %p325
        %p531 = pneg %p322
        %p532 = pneg %p346
        %p533 = pneg %p343
        %p534 = pneg %p367
        %p535 = pneg %p364
        %p536 = pneg %p388
        %p537 = pneg %p385
        %p538 = pneg %p414
        %p539 = pneg %p411
        %s540 = sand.u32 %s401, 1
        %s541 = scalar_lea.sflag [#allocation3], %s540
        %s542 = sand.u32 %s401, 1
        %s543 = smul.addr %s542, 224
        %s544 = scalar_lea.vmem [#allocation2], %s543
        %s545 = smul.u32 4, %s31
        %p546 = scmp.lt.s32.totalorder %s545, 7
        %s547 = scalar_select %p546, %s545, 7
        %s548 = smul.addr %s547, 7
        %s549 = smul.addr %s548, 4
        %s550 = scalar_lea.vmem %s0, %s549
        %s551 = smul.u32 4, %s31
        %s552 = smul.u32 4, %s31
        %v554 = vld [vmem:[%s550] sm:$0xff]
        %v555 = vld [vmem:[%s550 + $0x8] sm:$0xff]
        %v556 = vld [vmem:[%s550 + $0x10] sm:$0xff]
        %v557 = vld [vmem:[%s550 + $0x18] sm:$0xf]
        %v558 = vld [vmem:[%s550 + $0x1c] sm:$0xff]
        %v559 = vld [vmem:[%s550 + $0x24] sm:$0xff]
        %v560 = vld [vmem:[%s550 + $0x2c] sm:$0xff]
        %v561 = vld [vmem:[%s550 + $0x34] sm:$0xf]
        %v562 = vld [vmem:[%s550 + $0x38] sm:$0xff]
        %v563 = vld [vmem:[%s550 + $0x40] sm:$0xff]
        %v564 = vld [vmem:[%s550 + $0x48] sm:$0xff]
        %v565 = vld [vmem:[%s550 + $0x50] sm:$0xf]
        %v566 = vld [vmem:[%s550 + $0x54] sm:$0xff]
        %v567 = vld [vmem:[%s550 + $0x5c] sm:$0xff]
        %v568 = vld [vmem:[%s550 + $0x64] sm:$0xff]
        %v569 = vld [vmem:[%s550 + $0x6c] sm:$0xf]
        %v570 = vld [vmem:[%s1] sm:$0xf]
        %v571 = vld [vmem:[%s1 + $0x4] sm:$0xf]
        %v572 = vld [vmem:[%s1 + $0x8] sm:$0xf]
        %v573 = vld [vmem:[%s1 + $0xc] sm:$0xf]
        %v574 = vld [vmem:[%s1 + $0x10] sm:$0xf]
        %v575 = vld [vmem:[%s1 + $0x14] sm:$0xf]
        %v576 = vld [vmem:[%s1 + $0x18] sm:$0xf]
        %v577 = vld [vmem:[%s1 + $0x1c] sm:$0xf]
        %v578 = vld [vmem:[%s1 + $0x20] sm:$0xf]
        %v579 = vld [vmem:[%s1 + $0x24] sm:$0xf]
        %v580 = vld [vmem:[%s1 + $0x28] sm:$0xf]
        %v581 = vld [vmem:[%s1 + $0x2c] sm:$0xf]
        %v582 = vld [vmem:[%s1 + $0x30] sm:$0xf]
        %v583 = vld [vmem:[%s1 + $0x34] sm:$0xf]
        %v584 = vld [vmem:[%s1 + $0x38] sm:$0xf]
        %v585 = vld [vmem:[%s1 + $0x3c] sm:$0xf]
        %v586 = vld [vmem:[%s1 + $0x40] sm:$0xf]
        %v587 = vld [vmem:[%s1 + $0x44] sm:$0xf]
        %v588 = vld [vmem:[%s1 + $0x48] sm:$0xf]
        %v589 = vld [vmem:[%s1 + $0x4c] sm:$0xf]
        %v590 = vld [vmem:[%s1 + $0x50] sm:$0xf]
        %v591 = vld [vmem:[%s1 + $0x54] sm:$0xf]
        %v592 = vld [vmem:[%s1 + $0x58] sm:$0xf]
        %v593 = vld [vmem:[%s1 + $0x5c] sm:$0xf]
        %v594 = vld [vmem:[%s1 + $0x60] sm:$0xf]
        %v595 = vld [vmem:[%s1 + $0x64] sm:$0xf]
        %v596 = vld [vmem:[%s1 + $0x68] sm:$0xf]
        %v597 = vld [vmem:[%s1 + $0x6c] sm:$0xf]
        %v598 = vld [vmem:[%s1 + $0x70] sm:$0xf]
        %v599 = vld [vmem:[%s1 + $0x74] sm:$0xf]
        %v600 = vld [vmem:[%s1 + $0x78] sm:$0xf]
        %v601 = vld [vmem:[%s1 + $0x7c] sm:$0xf]
        %v602 = vld [vmem:[%s1 + $0x80] sm:$0xf]
        %v603 = vld [vmem:[%s1 + $0x84] sm:$0xf]
        %v604 = vld [vmem:[%s1 + $0x88] sm:$0xf]
        %v605 = vld [vmem:[%s1 + $0x8c] sm:$0xf]
        %v606 = vld [vmem:[%s1 + $0x90] sm:$0xf]
        %v607 = vld [vmem:[%s1 + $0x94] sm:$0xf]
        %v608 = vld [vmem:[%s1 + $0x98] sm:$0xf]
        %v609 = vld [vmem:[%s1 + $0x9c] sm:$0xf]
        %v610 = vld [vmem:[%s1 + $0xa0] sm:$0xf]
        %v611 = vld [vmem:[%s1 + $0xa4] sm:$0xf]
        %v612 = vld [vmem:[%s1 + $0xa8] sm:$0xf]
        %v613 = vld [vmem:[%s1 + $0xac] sm:$0xf]
        %v614 = vld [vmem:[%s1 + $0xb0] sm:$0xf]
        %v615 = vld [vmem:[%s1 + $0xb4] sm:$0xf]
        %v616 = vld [vmem:[%s1 + $0xb8] sm:$0xf]
        %v617 = vld [vmem:[%s1 + $0xbc] sm:$0xf]
        %v618 = vld [vmem:[%s1 + $0xc0] sm:$0xf]
        %v619 = vld [vmem:[%s1 + $0xc4] sm:$0xf]
        %v620 = vld [vmem:[%s1 + $0xc8] sm:$0xf]
        %v621 = vld [vmem:[%s1 + $0xcc] sm:$0xf]
        %v622 = vld [vmem:[%s1 + $0xd0] sm:$0xf]
        %v623 = vld [vmem:[%s1 + $0xd4] sm:$0xf]
        %v624 = vld [vmem:[%s1 + $0xd8] sm:$0xf]
        %v625 = vld [vmem:[%s1 + $0xdc] sm:$0xf]
        %v626 = vld [vmem:[%s1 + $0xe0] sm:$0xf]
        %v627 = vld [vmem:[%s1 + $0xe4] sm:$0xf]
        %v628 = vld [vmem:[%s1 + $0xe8] sm:$0xf]
        %v629 = vld [vmem:[%s1 + $0xec] sm:$0xf]
        %v630 = vld [vmem:[%s1 + $0xf0] sm:$0xf]
        %v631 = vld [vmem:[%s1 + $0xf4] sm:$0xf]
        %v632 = vld [vmem:[%s1 + $0xf8] sm:$0xf]
        %v633 = vld [vmem:[%s1 + $0xfc] sm:$0xf]
        %v634 = vld [vmem:[%s1 + $0x100] sm:$0xf]
        %v635 = vld [vmem:[%s1 + $0x104] sm:$0xf]
        %v636 = vld [vmem:[%s1 + $0x108] sm:$0xf]
        %v637 = vld [vmem:[%s1 + $0x10c] sm:$0xf]
        %v638 = vld [vmem:[%s1 + $0x110] sm:$0xf]
        %v639 = vld [vmem:[%s1 + $0x114] sm:$0xf]
        %v640 = vld [vmem:[%s1 + $0x118] sm:$0xf]
        %v641 = vld [vmem:[%s1 + $0x11c] sm:$0xf]
        %v642 = vld [vmem:[%s1 + $0x120] sm:$0xf]
        %v643 = vld [vmem:[%s1 + $0x124] sm:$0xf]
        %v644 = vld [vmem:[%s1 + $0x128] sm:$0xf]
        %v645 = vld [vmem:[%s1 + $0x12c] sm:$0xf]
        %v646 = vld [vmem:[%s1 + $0x130] sm:$0xf]
        %v647 = vld [vmem:[%s1 + $0x134] sm:$0xf]
        %v648 = vld [vmem:[%s1 + $0x138] sm:$0xf]
        %v649 = vld [vmem:[%s1 + $0x13c] sm:$0xf]
        %v650 = vld [vmem:[%s1 + $0x140] sm:$0xf]
        %v651 = vld [vmem:[%s1 + $0x144] sm:$0xf]
        %v652 = vld [vmem:[%s1 + $0x148] sm:$0xf]
        %v653 = vld [vmem:[%s1 + $0x14c] sm:$0xf]
        %v654 = vld [vmem:[%s1 + $0x150] sm:$0xf]
        %v655 = vld [vmem:[%s1 + $0x154] sm:$0xf]
        %v656 = vld [vmem:[%s1 + $0x158] sm:$0xf]
        %v657 = vld [vmem:[%s1 + $0x15c] sm:$0xf]
        %v658 = vld [vmem:[%s1 + $0x160] sm:$0xf]
        %v659 = vld [vmem:[%s1 + $0x164] sm:$0xf]
        %v660 = vld [vmem:[%s1 + $0x168] sm:$0xf]
        %v661 = vld [vmem:[%s1 + $0x16c] sm:$0xf]
        %v662 = vld [vmem:[%s1 + $0x170] sm:$0xf]
        %v663 = vld [vmem:[%s1 + $0x174] sm:$0xf]
        %v664 = vld [vmem:[%s1 + $0x178] sm:$0xf]
        %v665 = vld [vmem:[%s1 + $0x17c] sm:$0xf]
        %v666 = vld [vmem:[%s1 + $0x180] sm:$0xf]
        %v667 = vld [vmem:[%s1 + $0x184] sm:$0xf]
        %v668 = vld [vmem:[%s2] sm:$0x1]
        %v670 = vperm.slane %v668, 0
        %v688 = vunpack.c.l.b16 %v554
        %v689 = vunpack.c.h.b16 %v554
        %v690 = vunpack.c.l.b16 %v555
        %v691 = vunpack.c.h.b16 %v555
        %v692 = vunpack.c.l.b16 %v556
        %v693 = vunpack.c.h.b16 %v556
        %v694 = vunpack.c.l.b16 %v557
        %v695 = vunpack.c.l.b16 %v558
        %v696 = vunpack.c.h.b16 %v558
        %v697 = vunpack.c.l.b16 %v559
        %v698 = vunpack.c.h.b16 %v559
        %v699 = vunpack.c.l.b16 %v560
        %v700 = vunpack.c.h.b16 %v560
        %v701 = vunpack.c.l.b16 %v561
        %v702 = vunpack.c.l.b16 %v562
        %v703 = vunpack.c.h.b16 %v562
        %v704 = vunpack.c.l.b16 %v563
        %v705 = vunpack.c.h.b16 %v563
        %v706 = vunpack.c.l.b16 %v564
        %v707 = vunpack.c.h.b16 %v564
        %v708 = vunpack.c.l.b16 %v565
        %v709 = vunpack.c.l.b16 %v566
        %v710 = vunpack.c.h.b16 %v566
        %v711 = vunpack.c.l.b16 %v567
        %v712 = vunpack.c.h.b16 %v567
        %v713 = vunpack.c.l.b16 %v568
        %v714 = vunpack.c.h.b16 %v568
        %v715 = vunpack.c.l.b16 %v569
        %v716 = vpack.c.b16 %v695, %v688
        %v717 = vpack.c.b16 %v696, %v689
        %v718 = vpack.c.b16 %v697, %v690
        %v719 = vpack.c.b16 %v698, %v691
        %v720 = vpack.c.b16 %v699, %v692
        %v721 = vpack.c.b16 %v700, %v693
        %v722 = vpack.c.b16 %v701, %v694
        %v723 = vpack.c.b16 %v709, %v702
        %v724 = vpack.c.b16 %v710, %v703
        %v725 = vpack.c.b16 %v711, %v704
        %v726 = vpack.c.b16 %v712, %v705
        %v727 = vpack.c.b16 %v713, %v706
        %v728 = vpack.c.b16 %v714, %v707
        %v729 = vpack.c.b16 %v715, %v708
        %v840 = vunpack.c.l.b16 %v570
        %v841 = vunpack.c.l.b16 %v571
        %v842 = vunpack.c.l.b16 %v572
        %v843 = vunpack.c.l.b16 %v573
        %v844 = vunpack.c.l.b16 %v574
        %v845 = vunpack.c.l.b16 %v575
        %v846 = vunpack.c.l.b16 %v576
        %v847 = vunpack.c.l.b16 %v577
        %v848 = vunpack.c.l.b16 %v578
        %v849 = vunpack.c.l.b16 %v579
        %v850 = vunpack.c.l.b16 %v580
        %v851 = vunpack.c.l.b16 %v581
        %v852 = vunpack.c.l.b16 %v582
        %v853 = vunpack.c.l.b16 %v583
        %v854 = vunpack.c.l.b16 %v584
        %v855 = vunpack.c.l.b16 %v585
        %v856 = vunpack.c.l.b16 %v586
        %v857 = vunpack.c.l.b16 %v587
        %v858 = vunpack.c.l.b16 %v588
        %v859 = vunpack.c.l.b16 %v589
        %v860 = vunpack.c.l.b16 %v590
        %v861 = vunpack.c.l.b16 %v591
        %v862 = vunpack.c.l.b16 %v592
        %v863 = vunpack.c.l.b16 %v593
        %v864 = vunpack.c.l.b16 %v594
        %v865 = vunpack.c.l.b16 %v595
        %v866 = vunpack.c.l.b16 %v596
        %v867 = vunpack.c.l.b16 %v597
        %v868 = vunpack.c.l.b16 %v598
        %v869 = vunpack.c.l.b16 %v599
        %v870 = vunpack.c.l.b16 %v600
        %v871 = vunpack.c.l.b16 %v601
        %v872 = vunpack.c.l.b16 %v602
        %v873 = vunpack.c.l.b16 %v603
        %v874 = vunpack.c.l.b16 %v604
        %v875 = vunpack.c.l.b16 %v605
        %v876 = vunpack.c.l.b16 %v606
        %v877 = vunpack.c.l.b16 %v607
        %v878 = vunpack.c.l.b16 %v608
        %v879 = vunpack.c.l.b16 %v609
        %v880 = vunpack.c.l.b16 %v610
        %v881 = vunpack.c.l.b16 %v611
        %v882 = vunpack.c.l.b16 %v612
        %v883 = vunpack.c.l.b16 %v613
        %v884 = vunpack.c.l.b16 %v614
        %v885 = vunpack.c.l.b16 %v615
        %v886 = vunpack.c.l.b16 %v616
        %v887 = vunpack.c.l.b16 %v617
        %v888 = vunpack.c.l.b16 %v618
        %v889 = vunpack.c.l.b16 %v619
        %v890 = vunpack.c.l.b16 %v620
        %v891 = vunpack.c.l.b16 %v621
        %v892 = vunpack.c.l.b16 %v622
        %v893 = vunpack.c.l.b16 %v623
        %v894 = vunpack.c.l.b16 %v624
        %v895 = vunpack.c.l.b16 %v625
        %v896 = vunpack.c.l.b16 %v626
        %v897 = vunpack.c.l.b16 %v627
        %v898 = vunpack.c.l.b16 %v628
        %v899 = vunpack.c.l.b16 %v629
        %v900 = vunpack.c.l.b16 %v630
        %v901 = vunpack.c.l.b16 %v631
        %v902 = vunpack.c.l.b16 %v632
        %v903 = vunpack.c.l.b16 %v633
        %v904 = vunpack.c.l.b16 %v634
        %v905 = vunpack.c.l.b16 %v635
        %v906 = vunpack.c.l.b16 %v636
        %v907 = vunpack.c.l.b16 %v637
        %v908 = vunpack.c.l.b16 %v638
        %v909 = vunpack.c.l.b16 %v639
        %v910 = vunpack.c.l.b16 %v640
        %v911 = vunpack.c.l.b16 %v641
        %v912 = vunpack.c.l.b16 %v642
        %v913 = vunpack.c.l.b16 %v643
        %v914 = vunpack.c.l.b16 %v644
        %v915 = vunpack.c.l.b16 %v645
        %v916 = vunpack.c.l.b16 %v646
        %v917 = vunpack.c.l.b16 %v647
        %v918 = vunpack.c.l.b16 %v648
        %v919 = vunpack.c.l.b16 %v649
        %v920 = vunpack.c.l.b16 %v650
        %v921 = vunpack.c.l.b16 %v651
        %v922 = vunpack.c.l.b16 %v652
        %v923 = vunpack.c.l.b16 %v653
        %v924 = vunpack.c.l.b16 %v654
        %v925 = vunpack.c.l.b16 %v655
        %v926 = vunpack.c.l.b16 %v656
        %v927 = vunpack.c.l.b16 %v657
        %v928 = vunpack.c.l.b16 %v658
        %v929 = vunpack.c.l.b16 %v659
        %v930 = vunpack.c.l.b16 %v660
        %v931 = vunpack.c.l.b16 %v661
        %v932 = vunpack.c.l.b16 %v662
        %v933 = vunpack.c.l.b16 %v663
        %v934 = vunpack.c.l.b16 %v664
        %v935 = vunpack.c.l.b16 %v665
        %v936 = vunpack.c.l.b16 %v666
        %v937 = vunpack.c.l.b16 %v667
        %v938 = vpack.c.b16 %v841, %v840
        %v939 = vpack.c.b16 %v843, %v842
        %v940 = vpack.c.b16 %v845, %v844
        %v941 = vpack.c.b16 %v847, %v846
        %v942 = vpack.c.b16 %v849, %v848
        %v943 = vpack.c.b16 %v851, %v850
        %v944 = vpack.c.b16 %v853, %v852
        %v945 = vpack.c.b16 %v855, %v854
        %v946 = vpack.c.b16 %v857, %v856
        %v947 = vpack.c.b16 %v859, %v858
        %v948 = vpack.c.b16 %v861, %v860
        %v949 = vpack.c.b16 %v863, %v862
        %v950 = vpack.c.b16 %v865, %v864
        %v951 = vpack.c.b16 %v867, %v866
        %v952 = vpack.c.b16 %v869, %v868
        %v953 = vpack.c.b16 %v871, %v870
        %v954 = vpack.c.b16 %v873, %v872
        %v955 = vpack.c.b16 %v875, %v874
        %v956 = vpack.c.b16 %v877, %v876
        %v957 = vpack.c.b16 %v879, %v878
        %v958 = vpack.c.b16 %v881, %v880
        %v959 = vpack.c.b16 %v883, %v882
        %v960 = vpack.c.b16 %v885, %v884
        %v961 = vpack.c.b16 %v887, %v886
        %v962 = vpack.c.b16 %v889, %v888
        %v963 = vpack.c.b16 %v891, %v890
        %v964 = vpack.c.b16 %v893, %v892
        %v965 = vpack.c.b16 %v895, %v894
        %v966 = vpack.c.b16 %v897, %v896
        %v967 = vpack.c.b16 %v899, %v898
        %v968 = vpack.c.b16 %v901, %v900
        %v969 = vpack.c.b16 %v903, %v902
        %v970 = vpack.c.b16 %v905, %v904
        %v971 = vpack.c.b16 %v907, %v906
        %v972 = vpack.c.b16 %v909, %v908
        %v973 = vpack.c.b16 %v911, %v910
        %v974 = vpack.c.b16 %v913, %v912
        %v975 = vpack.c.b16 %v915, %v914
        %v976 = vpack.c.b16 %v917, %v916
        %v977 = vpack.c.b16 %v919, %v918
        %v978 = vpack.c.b16 %v921, %v920
        %v979 = vpack.c.b16 %v923, %v922
        %v980 = vpack.c.b16 %v925, %v924
        %v981 = vpack.c.b16 %v927, %v926
        %v982 = vpack.c.b16 %v929, %v928
        %v983 = vpack.c.b16 %v931, %v930
        %v984 = vpack.c.b16 %v933, %v932
        %v985 = vpack.c.b16 %v935, %v934
        %v986 = vpack.c.b16 %v937, %v936
        %vm1036 = vcmask 130048
        %v1038 = vsel %vm1036, %v722, 0
        %v1041 = vsel %vm1036, %v729, 0
        %1043 = vmatpush.bf16.msra.mxu0 %v945
        %1044 = vmatpush.bf16.msra.mxu0 %v944
        %1045 = vmatpush.bf16.msra.mxu0 %v943
        %1046 = vmatpush.bf16.msra.mxu0 %v942
        %1047 = vmatpush.bf16.msra.mxu0 %v941
        %1048 = vmatpush.bf16.msra.mxu0 %v940
        %1049 = vmatpush.bf16.msra.mxu0 %v939
        %1050 = vmatpush.bf16.msra.mxu0 %v938
        %1051 = vmatmul.bf16.gmra.mxu0 %v716
        %v1052 = vpop.f32.mrf.mxu0
        %v1053 = vadd.f32 %v670, %v1052
        %v1054 = vpop.f32.mrf.mxu0
        %v1055 = vadd.f32 %v670, %v1054
        %1056 = vmatmul.bf16.gmra.mxu0 %v723
        %v1057 = vpop.f32.mrf.mxu0
        %v1058 = vadd.f32 %v670, %v1057
        %v1059 = vpop.f32.mrf.mxu0
        %v1060 = vadd.f32 %v670, %v1059
        %1061 = vdwg.mxu0
        %1062 = vmatpush.bf16.msra.mxu0 %v953
        %1063 = vmatpush.bf16.msra.mxu0 %v952
        %1064 = vmatpush.bf16.msra.mxu0 %v951
        %1065 = vmatpush.bf16.msra.mxu0 %v950
        %1066 = vmatpush.bf16.msra.mxu0 %v949
        %1067 = vmatpush.bf16.msra.mxu0 %v948
        %1068 = vmatpush.bf16.msra.mxu0 %v947
        %1069 = vmatpush.bf16.msra.mxu0 %v946
        %1070 = vmatmul.bf16.gmra.mxu0 %v717
        %v1071 = vpop.f32.mrf.mxu0
        %v1072 = vadd.f32 %v1053, %v1071
        %v1073 = vpop.f32.mrf.mxu0
        %v1074 = vadd.f32 %v1055, %v1073
        %1075 = vmatmul.bf16.gmra.mxu0 %v724
        %v1076 = vpop.f32.mrf.mxu0
        %v1077 = vadd.f32 %v1058, %v1076
        %v1078 = vpop.f32.mrf.mxu0
        %v1079 = vadd.f32 %v1060, %v1078
        %1080 = vdwg.mxu0
        %1081 = vmatpush.bf16.msra.mxu0 %v961
        %1082 = vmatpush.bf16.msra.mxu0 %v960
        %1083 = vmatpush.bf16.msra.mxu0 %v959
        %1084 = vmatpush.bf16.msra.mxu0 %v958
        %1085 = vmatpush.bf16.msra.mxu0 %v957
        %1086 = vmatpush.bf16.msra.mxu0 %v956
        %1087 = vmatpush.bf16.msra.mxu0 %v955
        %1088 = vmatpush.bf16.msra.mxu0 %v954
        %1089 = vmatmul.bf16.gmra.mxu0 %v718
        %v1090 = vpop.f32.mrf.mxu0
        %v1091 = vadd.f32 %v1072, %v1090
        %v1092 = vpop.f32.mrf.mxu0
        %v1093 = vadd.f32 %v1074, %v1092
        %1094 = vmatmul.bf16.gmra.mxu0 %v725
        %v1095 = vpop.f32.mrf.mxu0
        %v1096 = vadd.f32 %v1077, %v1095
        %v1097 = vpop.f32.mrf.mxu0
        %v1098 = vadd.f32 %v1079, %v1097
        %1099 = vdwg.mxu0
        %1100 = vmatpush.bf16.msra.mxu0 %v969
        %1101 = vmatpush.bf16.msra.mxu0 %v968
        %1102 = vmatpush.bf16.msra.mxu0 %v967
        %1103 = vmatpush.bf16.msra.mxu0 %v966
        %1104 = vmatpush.bf16.msra.mxu0 %v965
        %1105 = vmatpush.bf16.msra.mxu0 %v964
        %1106 = vmatpush.bf16.msra.mxu0 %v963
        %1107 = vmatpush.bf16.msra.mxu0 %v962
        %1108 = vmatmul.bf16.gmra.mxu0 %v719
        %v1109 = vpop.f32.mrf.mxu0
        %v1110 = vadd.f32 %v1091, %v1109
        %v1111 = vpop.f32.mrf.mxu0
        %v1112 = vadd.f32 %v1093, %v1111
        %1113 = vmatmul.bf16.gmra.mxu0 %v726
        %v1114 = vpop.f32.mrf.mxu0
        %v1115 = vadd.f32 %v1096, %v1114
        %v1116 = vpop.f32.mrf.mxu0
        %v1117 = vadd.f32 %v1098, %v1116
        %1118 = vdwg.mxu0
        %1119 = vmatpush.bf16.msra.mxu0 %v977
        %1120 = vmatpush.bf16.msra.mxu0 %v976
        %1121 = vmatpush.bf16.msra.mxu0 %v975
        %1122 = vmatpush.bf16.msra.mxu0 %v974
        %1123 = vmatpush.bf16.msra.mxu0 %v973
        %1124 = vmatpush.bf16.msra.mxu0 %v972
        %1125 = vmatpush.bf16.msra.mxu0 %v971
        %1126 = vmatpush.bf16.msra.mxu0 %v970
        %1127 = vmatmul.bf16.gmra.mxu0 %v720
        %v1128 = vpop.f32.mrf.mxu0
        %v1129 = vadd.f32 %v1110, %v1128
        %v1130 = vpop.f32.mrf.mxu0
        %v1131 = vadd.f32 %v1112, %v1130
        %1132 = vmatmul.bf16.gmra.mxu0 %v727
        %v1133 = vpop.f32.mrf.mxu0
        %v1134 = vadd.f32 %v1115, %v1133
        %v1135 = vpop.f32.mrf.mxu0
        %v1136 = vadd.f32 %v1117, %v1135
        %1137 = vdwg.mxu0
        %1138 = vmatpush.bf16.msra.mxu0 %v985
        %1139 = vmatpush.bf16.msra.mxu0 %v984
        %1140 = vmatpush.bf16.msra.mxu0 %v983
        %1141 = vmatpush.bf16.msra.mxu0 %v982
        %1142 = vmatpush.bf16.msra.mxu0 %v981
        %1143 = vmatpush.bf16.msra.mxu0 %v980
        %1144 = vmatpush.bf16.msra.mxu0 %v979
        %1145 = vmatpush.bf16.msra.mxu0 %v978
        %1146 = vmatmul.bf16.gmra.mxu0 %v721
        %v1147 = vpop.f32.mrf.mxu0
        %v1148 = vadd.f32 %v1129, %v1147
        %v1149 = vpop.f32.mrf.mxu0
        %v1150 = vadd.f32 %v1131, %v1149
        %1151 = vmatmul.bf16.gmra.mxu0 %v728
        %v1152 = vpop.f32.mrf.mxu0
        %v1153 = vadd.f32 %v1134, %v1152
        %v1154 = vpop.f32.mrf.mxu0
        %v1155 = vadd.f32 %v1136, %v1154
        %1156 = vdwg.mxu0
        %1157 = vmatpush.bf16.msra.mxu0 0
        %1158 = vmatpush.bf16.msra.mxu0 0
        %1159 = vmatpush.bf16.msra.mxu0 0
        %1160 = vmatpush.bf16.msra.mxu0 0
        %1161 = vmatpush.bf16.msra.mxu0 0
        %1162 = vmatpush.bf16.msra.mxu0 0
        %1163 = vmatpush.bf16.msra.mxu0 0
        %1164 = vmatpush.bf16.msra.mxu0 %v986
        %1165 = vmatmul.bf16.gmra.mxu0 %v1038
        %v1166 = vpop.f32.mrf.mxu0
        %v1167 = vadd.f32 %v1148, %v1166
        %v1168 = vpop.f32.mrf.mxu0
        %v1169 = vadd.f32 %v1150, %v1168
        %1170 = vmatmul.bf16.gmra.mxu0 %v1041
        %v1171 = vpop.f32.mrf.mxu0
        %v1172 = vadd.f32 %v1153, %v1171
        %v1173 = vpop.f32.mrf.mxu0
        %v1174 = vadd.f32 %v1155, %v1173
        %1175 = vdwg.mxu0
        %v1176 = vmax.f32 %v1167, 0.0
        %v1177 = vmax.f32 %v1169, 0.0
        %v1178 = vmax.f32 %v1172, 0.0
        %v1179 = vmax.f32 %v1174, 0.0
        %v1180 = vld [vmem:[%s3] sm:$0xf]
        %v1181 = vld [vmem:[%s3 + $0x4] sm:$0xf]
        %v1182 = vld [vmem:[%s3 + $0x8] sm:$0xf]
        %v1183 = vld [vmem:[%s3 + $0xc] sm:$0xf]
        %v1184 = vld [vmem:[%s3 + $0x10] sm:$0xf]
        %v1185 = vld [vmem:[%s3 + $0x14] sm:$0xf]
        %v1186 = vld [vmem:[%s3 + $0x18] sm:$0xf]
        %v1187 = vld [vmem:[%s3 + $0x1c] sm:$0xf]
        %v1188 = vld [vmem:[%s3 + $0x20] sm:$0xf]
        %v1189 = vld [vmem:[%s3 + $0x24] sm:$0xf]
        %v1190 = vld [vmem:[%s3 + $0x28] sm:$0xf]
        %v1191 = vld [vmem:[%s3 + $0x2c] sm:$0xf]
        %v1192 = vld [vmem:[%s3 + $0x30] sm:$0xf]
        %v1193 = vld [vmem:[%s3 + $0x34] sm:$0xf]
        %v1194 = vld [vmem:[%s3 + $0x38] sm:$0xf]
        %v1195 = vld [vmem:[%s3 + $0x3c] sm:$0xf]
        %v1196 = vld [vmem:[%s4] sm:$0x1]
        %v1197 = vpack.c.bf16 %v1177, %v1176
        %v1198 = vpack.c.bf16 %v1179, %v1178
        %v1200 = vperm.slane %v1196, 0
        %v1218 = vunpack.c.l.b16 %v1180
        %v1219 = vunpack.c.l.b16 %v1181
        %v1220 = vunpack.c.l.b16 %v1182
        %v1221 = vunpack.c.l.b16 %v1183
        %v1222 = vunpack.c.l.b16 %v1184
        %v1223 = vunpack.c.l.b16 %v1185
        %v1224 = vunpack.c.l.b16 %v1186
        %v1225 = vunpack.c.l.b16 %v1187
        %v1226 = vunpack.c.l.b16 %v1188
        %v1227 = vunpack.c.l.b16 %v1189
        %v1228 = vunpack.c.l.b16 %v1190
        %v1229 = vunpack.c.l.b16 %v1191
        %v1230 = vunpack.c.l.b16 %v1192
        %v1231 = vunpack.c.l.b16 %v1193
        %v1232 = vunpack.c.l.b16 %v1194
        %v1233 = vunpack.c.l.b16 %v1195
        %v1234 = vpack.c.b16 %v1219, %v1218
        %v1235 = vpack.c.b16 %v1221, %v1220
        %v1236 = vpack.c.b16 %v1223, %v1222
        %v1237 = vpack.c.b16 %v1225, %v1224
        %v1238 = vpack.c.b16 %v1227, %v1226
        %v1239 = vpack.c.b16 %v1229, %v1228
        %v1240 = vpack.c.b16 %v1231, %v1230
        %v1241 = vpack.c.b16 %v1233, %v1232
        %1250 = vmatpush.bf16.msra.mxu0 %v1241
        %1251 = vmatpush.bf16.msra.mxu0 %v1240
        %1252 = vmatpush.bf16.msra.mxu0 %v1239
        %1253 = vmatpush.bf16.msra.mxu0 %v1238
        %1254 = vmatpush.bf16.msra.mxu0 %v1237
        %1255 = vmatpush.bf16.msra.mxu0 %v1236
        %1256 = vmatpush.bf16.msra.mxu0 %v1235
        %1257 = vmatpush.bf16.msra.mxu0 %v1234
        %1258 = vmatmul.bf16.gmra.mxu0 %v1197
        %v1259 = vpop.f32.mrf.mxu0
        %v1260 = vadd.f32 %v1200, %v1259
        %v1261 = vpop.f32.mrf.mxu0
        %v1262 = vadd.f32 %v1200, %v1261
        %1263 = vmatmul.bf16.gmra.mxu0 %v1198
        %v1264 = vpop.f32.mrf.mxu0
        %v1265 = vadd.f32 %v1200, %v1264
        %v1266 = vpop.f32.mrf.mxu0
        %v1267 = vadd.f32 %v1200, %v1266
        %1268 = vdwg.mxu0
        %v1269 = vmax.f32 %v1260, 0.0
        %v1270 = vmax.f32 %v1262, 0.0
        %v1271 = vmax.f32 %v1265, 0.0
        %v1272 = vmax.f32 %v1267, 0.0
        %v1273 = vld [vmem:[%s5] sm:$0xf]
        %v1274 = vld [vmem:[%s5 + $0x4] sm:$0xf]
        %v1275 = vld [vmem:[%s5 + $0x8] sm:$0xf]
        %v1276 = vld [vmem:[%s5 + $0xc] sm:$0xf]
        %v1277 = vld [vmem:[%s5 + $0x10] sm:$0xf]
        %v1278 = vld [vmem:[%s5 + $0x14] sm:$0xf]
        %v1279 = vld [vmem:[%s5 + $0x18] sm:$0xf]
        %v1280 = vld [vmem:[%s5 + $0x1c] sm:$0xf]
        %v1281 = vld [vmem:[%s6] sm:$0x1]
        %v1282 = vpack.c.bf16 %v1270, %v1269
        %v1283 = vpack.c.bf16 %v1272, %v1271
        %v1285 = vperm.slane %v1281, 0
        %v1295 = vunpack.c.l.b16 %v1273
        %v1296 = vunpack.c.l.b16 %v1274
        %v1297 = vunpack.c.l.b16 %v1275
        %v1298 = vunpack.c.l.b16 %v1276
        %v1299 = vunpack.c.l.b16 %v1277
        %v1300 = vunpack.c.l.b16 %v1278
        %v1301 = vunpack.c.l.b16 %v1279
        %v1302 = vunpack.c.l.b16 %v1280
        %v1303 = vpack.c.b16 %v1296, %v1295
        %v1304 = vpack.c.b16 %v1298, %v1297
        %v1305 = vpack.c.b16 %v1300, %v1299
        %v1306 = vpack.c.b16 %v1302, %v1301
        %vm1311 = vcmask 523264
        %v1313 = vsel %vm1311, %v1282, 0
        %v1316 = vsel %vm1311, %v1283, 0
        %1318 = vmatpush.bf16.msra.mxu0 0
        %1319 = vmatpush.bf16.msra.mxu0 0
        %1320 = vmatpush.bf16.msra.mxu0 0
        %1321 = vmatpush.bf16.msra.mxu0 0
        %1322 = vmatpush.bf16.msra.mxu0 %v1306
        %1323 = vmatpush.bf16.msra.mxu0 %v1305
        %1324 = vmatpush.bf16.msra.mxu0 %v1304
        %1325 = vmatpush.bf16.msra.mxu0 %v1303
        %1326 = vmatmul.bf16.gmra.mxu0 %v1313
        %v1327 = vpop.f32.mrf.mxu0
        %v1328 = vadd.f32 %v1285, %v1327
        %v1329 = vpop.f32.mrf.mxu0
        %v1330 = vadd.f32 %v1285, %v1329
        %1331 = vmatmul.bf16.gmra.mxu0 %v1316
        %v1332 = vpop.f32.mrf.mxu0
        %v1333 = vadd.f32 %v1285, %v1332
        %v1334 = vpop.f32.mrf.mxu0
        %v1335 = vadd.f32 %v1285, %v1334
        %1336 = vdwg.mxu0
        %v1337 = vmax.f32 %v1328, 0.0
        %v1338 = vmax.f32 %v1330, 0.0
        %v1339 = vmax.f32 %v1333, 0.0
        %v1340 = vmax.f32 %v1335, 0.0
        %v1341 = vld [vmem:[%s7] sm:$0xf]
        %v1342 = vld [vmem:[%s7 + $0x4] sm:$0x3]
        %v1343 = vld [vmem:[%s8] sm:$0x1]
        %v1344 = vpack.c.bf16 %v1338, %v1337
        %v1345 = vpack.c.bf16 %v1340, %v1339
        %v1347 = vperm.slane %v1343, 0
        %v1351 = vunpack.c.l.b16 %v1341
        %v1352 = vunpack.c.l.b16 %v1342
        %v1353 = vpack.c.b16 %v1352, %v1351
        %vm1354 = vcmask 97280
        %v1356 = vsel %vm1354, %v1344, 0
        %v1359 = vsel %vm1354, %v1345, 0
        %vm1361 = vcmask 1045504
        %v1363 = vsel %vm1361, %v1353, 0
        %1365 = vmatpush.bf16.msra.mxu0 0
        %1366 = vmatpush.bf16.msra.mxu0 0
        %1367 = vmatpush.bf16.msra.mxu0 0
        %1368 = vmatpush.bf16.msra.mxu0 0
        %1369 = vmatpush.bf16.msra.mxu0 0
        %1370 = vmatpush.bf16.msra.mxu0 0
        %1371 = vmatpush.bf16.msra.mxu0 0
        %1372 = vmatpush.bf16.msra.mxu0 %v1363
        %1373 = vmatmul.bf16.gmra.mxu0 %v1356
        %v1374 = vpop.f32.mrf.mxu0
        %v1375 = vadd.f32 %v1347, %v1374
        %v1376 = vpop.f32.mrf.mxu0
        %v1377 = vadd.f32 %v1347, %v1376
        %1378 = vmatmul.bf16.gmra.mxu0 %v1359
        %v1379 = vpop.f32.mrf.mxu0
        %v1380 = vadd.f32 %v1347, %v1379
        %v1381 = vpop.f32.mrf.mxu0
        %v1382 = vadd.f32 %v1347, %v1381
        %1383 = vdwg.mxu0
        %v1384 = vld [vmem:[%s9] sm:$0x3]
        %v1385 = vld [vmem:[%s10] sm:$0x1]
        %v1386 = vpack.c.bf16 %v1377, %v1375
        %v1387 = vpack.c.bf16 %v1382, %v1380
        %v1389 = vperm.slane %v1385, 0
        %vm1391 = vcmask 23552
        %v1393 = vsel %vm1391, %v1386, 0
        %v1396 = vsel %vm1391, %v1387, 0
        %vm1398 = vcmask 1040384
        %vm1399 = vcmask 1041408
        %v1400 = vsel %vm1398, 4294967295, 65535
        %v1401 = vsel %vm1399, %v1400, 0
        %v1403 = vand.u32 %v1384, %v1401
        %1405 = vmatpush.bf16.msra.mxu0 0
        %1406 = vmatpush.bf16.msra.mxu0 0
        %1407 = vmatpush.bf16.msra.mxu0 0
        %1408 = vmatpush.bf16.msra.mxu0 0
        %1409 = vmatpush.bf16.msra.mxu0 0
        %1410 = vmatpush.bf16.msra.mxu0 0
        %1411 = vmatpush.bf16.msra.mxu0 0
        %1412 = vmatpush.bf16.msra.mxu0 %v1403
        %1413 = vmatmul.bf16.gmra.mxu0 %v1393
        %v1414 = vpop.f32.mrf.mxu0
        %v1415 = vadd.f32 %v1389, %v1414
        %v1416 = vpop.f32.mrf.mxu0
        %v1417 = vadd.f32 %v1389, %v1416
        %1418 = vmatmul.bf16.gmra.mxu0 %v1396
        %v1419 = vpop.f32.mrf.mxu0
        %v1420 = vadd.f32 %v1389, %v1419
        %v1421 = vpop.f32.mrf.mxu0
        %v1422 = vadd.f32 %v1389, %v1421
        %1423 = vdwg.mxu0
        %v1424 = vmax.f32 %v1415, 0.0
        %v1425 = vmax.f32 %v1417, 0.0
        %v1426 = vmax.f32 %v1420, 0.0
        %v1427 = vmax.f32 %v1422, 0.0
        %v1428 = vld [vmem:[%s11] sm:$0xf]
        %v1429 = vld [vmem:[%s11 + $0x4] sm:$0x3]
        %v1430 = vld [vmem:[%s12] sm:$0x1]
        %v1431 = vpack.c.bf16 %v1425, %v1424
        %v1432 = vpack.c.bf16 %v1427, %v1426
        %v1434 = vperm.slane %v1430, 0
        %v1438 = vunpack.c.l.b16 %v1428
        %v1439 = vunpack.c.l.b16 %v1429
        %v1440 = vpack.c.b16 %v1439, %v1438
        %v1442 = vsel %vm1354, %v1431, 0
        %v1445 = vsel %vm1354, %v1432, 0
        %v1448 = vsel %vm1361, %v1440, 0
        %1450 = vmatpush.bf16.msra.mxu0 0
        %1451 = vmatpush.bf16.msra.mxu0 0
        %1452 = vmatpush.bf16.msra.mxu0 0
        %1453 = vmatpush.bf16.msra.mxu0 0
        %1454 = vmatpush.bf16.msra.mxu0 0
        %1455 = vmatpush.bf16.msra.mxu0 0
        %1456 = vmatpush.bf16.msra.mxu0 0
        %1457 = vmatpush.bf16.msra.mxu0 %v1448
        %1458 = vmatmul.bf16.gmra.mxu0 %v1442
        %v1459 = vpop.f32.mrf.mxu0
        %v1460 = vadd.f32 %v1434, %v1459
        %v1461 = vpop.f32.mrf.mxu0
        %v1462 = vadd.f32 %v1434, %v1461
        %1463 = vmatmul.bf16.gmra.mxu0 %v1445
        %v1464 = vpop.f32.mrf.mxu0
        %v1465 = vadd.f32 %v1434, %v1464
        %v1466 = vpop.f32.mrf.mxu0
        %v1467 = vadd.f32 %v1434, %v1466
        %1468 = vdwg.mxu0
        %v1469 = vmax.f32 %v1460, 0.0
        %v1470 = vmax.f32 %v1462, 0.0
        %v1471 = vmax.f32 %v1465, 0.0
        %v1472 = vmax.f32 %v1467, 0.0
        %v1473 = vld [vmem:[%s13] sm:$0xf]
        %v1474 = vld [vmem:[%s13 + $0x4] sm:$0xf]
        %v1475 = vld [vmem:[%s13 + $0x8] sm:$0xf]
        %v1476 = vld [vmem:[%s13 + $0xc] sm:$0xf]
        %v1477 = vld [vmem:[%s13 + $0x10] sm:$0xf]
        %v1478 = vld [vmem:[%s13 + $0x14] sm:$0xf]
        %v1479 = vld [vmem:[%s13 + $0x18] sm:$0xf]
        %v1480 = vld [vmem:[%s13 + $0x1c] sm:$0xf]
        %v1481 = vld [vmem:[%s14] sm:$0x1]
        %v1482 = vpack.c.bf16 %v1470, %v1469
        %v1483 = vpack.c.bf16 %v1472, %v1471
        %v1485 = vperm.slane %v1481, 0
        %v1495 = vunpack.c.l.b16 %v1473
        %v1496 = vunpack.c.l.b16 %v1474
        %v1497 = vunpack.c.l.b16 %v1475
        %v1498 = vunpack.c.l.b16 %v1476
        %v1499 = vunpack.c.l.b16 %v1477
        %v1500 = vunpack.c.l.b16 %v1478
        %v1501 = vunpack.c.l.b16 %v1479
        %v1502 = vunpack.c.l.b16 %v1480
        %v1503 = vpack.c.b16 %v1496, %v1495
        %v1504 = vpack.c.b16 %v1498, %v1497
        %v1505 = vpack.c.b16 %v1500, %v1499
        %v1506 = vpack.c.b16 %v1502, %v1501
        %v1512 = vsel %vm1311, %v1482, 0
        %v1515 = vsel %vm1311, %v1483, 0
        %1517 = vmatpush.bf16.msra.mxu0 0
        %1518 = vmatpush.bf16.msra.mxu0 0
        %1519 = vmatpush.bf16.msra.mxu0 0
        %1520 = vmatpush.bf16.msra.mxu0 0
        %1521 = vmatpush.bf16.msra.mxu0 %v1506
        %1522 = vmatpush.bf16.msra.mxu0 %v1505
        %1523 = vmatpush.bf16.msra.mxu0 %v1504
        %1524 = vmatpush.bf16.msra.mxu0 %v1503
        %1525 = vmatmul.bf16.gmra.mxu0 %v1512
        %v1526 = vpop.f32.mrf.mxu0
        %v1527 = vadd.f32 %v1485, %v1526
        %v1528 = vpop.f32.mrf.mxu0
        %v1529 = vadd.f32 %v1485, %v1528
        %1530 = vmatmul.bf16.gmra.mxu0 %v1515
        %v1531 = vpop.f32.mrf.mxu0
        %v1532 = vadd.f32 %v1485, %v1531
        %v1533 = vpop.f32.mrf.mxu0
        %v1534 = vadd.f32 %v1485, %v1533
        %1535 = vdwg.mxu0
        %v1536 = vmax.f32 %v1527, 0.0
        %v1537 = vmax.f32 %v1529, 0.0
        %v1538 = vmax.f32 %v1532, 0.0
        %v1539 = vmax.f32 %v1534, 0.0
        %v1540 = vld [vmem:[%s15] sm:$0xff]
        %v1541 = vld [vmem:[%s15 + $0x8] sm:$0xff]
        %v1542 = vld [vmem:[%s15 + $0x10] sm:$0xff]
        %v1543 = vld [vmem:[%s15 + $0x18] sm:$0xf]
        %v1544 = vld [vmem:[%s15 + $0x1c] sm:$0xff]
        %v1545 = vld [vmem:[%s15 + $0x24] sm:$0xff]
        %v1546 = vld [vmem:[%s15 + $0x2c] sm:$0xff]
        %v1547 = vld [vmem:[%s15 + $0x34] sm:$0xf]
        %v1548 = vld [vmem:[%s15 + $0x38] sm:$0xff]
        %v1549 = vld [vmem:[%s15 + $0x40] sm:$0xff]
        %v1550 = vld [vmem:[%s15 + $0x48] sm:$0xff]
        %v1551 = vld [vmem:[%s15 + $0x50] sm:$0xf]
        %v1552 = vld [vmem:[%s15 + $0x54] sm:$0xff]
        %v1553 = vld [vmem:[%s15 + $0x5c] sm:$0xff]
        %v1554 = vld [vmem:[%s15 + $0x64] sm:$0xff]
        %v1555 = vld [vmem:[%s15 + $0x6c] sm:$0xf]
        %v1556 = vld [vmem:[%s15 + $0x70] sm:$0xff]
        %v1557 = vld [vmem:[%s15 + $0x78] sm:$0xff]
        %v1558 = vld [vmem:[%s15 + $0x80] sm:$0xff]
        %v1559 = vld [vmem:[%s15 + $0x88] sm:$0xf]
        %v1560 = vld [vmem:[%s15 + $0x8c] sm:$0xff]
        %v1561 = vld [vmem:[%s15 + $0x94] sm:$0xff]
        %v1562 = vld [vmem:[%s15 + $0x9c] sm:$0xff]
        %v1563 = vld [vmem:[%s15 + $0xa4] sm:$0xf]
        %v1564 = vld [vmem:[%s15 + $0xa8] sm:$0xff]
        %v1565 = vld [vmem:[%s15 + $0xb0] sm:$0xff]
        %v1566 = vld [vmem:[%s15 + $0xb8] sm:$0xff]
        %v1567 = vld [vmem:[%s15 + $0xc0] sm:$0xf]
        %v1568 = vld [vmem:[%s15 + $0xc4] sm:$0xff]
        %v1569 = vld [vmem:[%s15 + $0xcc] sm:$0xff]
        %v1570 = vld [vmem:[%s15 + $0xd4] sm:$0xff]
        %v1571 = vld [vmem:[%s15 + $0xdc] sm:$0xf]
        %v1572 = vld [vmem:[%s15 + $0xe0] sm:$0xff]
        %v1573 = vld [vmem:[%s15 + $0xe8] sm:$0xff]
        %v1574 = vld [vmem:[%s15 + $0xf0] sm:$0xff]
        %v1575 = vld [vmem:[%s15 + $0xf8] sm:$0xf]
        %v1576 = vld [vmem:[%s15 + $0xfc] sm:$0xff]
        %v1577 = vld [vmem:[%s15 + $0x104] sm:$0xff]
        %v1578 = vld [vmem:[%s15 + $0x10c] sm:$0xff]
        %v1579 = vld [vmem:[%s15 + $0x114] sm:$0xf]
        %v1580 = vld [vmem:[%s15 + $0x118] sm:$0xff]
        %v1581 = vld [vmem:[%s15 + $0x120] sm:$0xff]
        %v1582 = vld [vmem:[%s15 + $0x128] sm:$0xff]
        %v1583 = vld [vmem:[%s15 + $0x130] sm:$0xf]
        %v1584 = vld [vmem:[%s15 + $0x134] sm:$0xff]
        %v1585 = vld [vmem:[%s15 + $0x13c] sm:$0xff]
        %v1586 = vld [vmem:[%s15 + $0x144] sm:$0xff]
        %v1587 = vld [vmem:[%s15 + $0x14c] sm:$0xf]
        %v1588 = vld [vmem:[%s15 + $0x150] sm:$0xff]
        %v1589 = vld [vmem:[%s15 + $0x158] sm:$0xff]
        %v1590 = vld [vmem:[%s15 + $0x160] sm:$0xff]
        %v1591 = vld [vmem:[%s15 + $0x168] sm:$0xf]
        %v1592 = vld [vmem:[%s15 + $0x16c] sm:$0xff]
        %v1593 = vld [vmem:[%s15 + $0x174] sm:$0xff]
        %v1594 = vld [vmem:[%s15 + $0x17c] sm:$0xff]
        %v1595 = vld [vmem:[%s15 + $0x184] sm:$0xf]
        %v1596 = vld [vmem:[%s15 + $0x188] sm:$0xff]
        %v1597 = vld [vmem:[%s15 + $0x190] sm:$0xff]
        %v1598 = vld [vmem:[%s15 + $0x198] sm:$0xff]
        %v1599 = vld [vmem:[%s15 + $0x1a0] sm:$0xf]
        %v1600 = vld [vmem:[%s15 + $0x1a4] sm:$0xff]
        %v1601 = vld [vmem:[%s15 + $0x1ac] sm:$0xff]
        %v1602 = vld [vmem:[%s15 + $0x1b4] sm:$0xff]
        %v1603 = vld [vmem:[%s15 + $0x1bc] sm:$0xf]
        %v1604 = vld [vmem:[%s16] sm:$0x7f]
        %v1605 = vpack.c.bf16 %v1537, %v1536
        %v1606 = vpack.c.bf16 %v1539, %v1538
        %v1608 = vperm.slane %v1604, 0
        %v1609 = vperm.slane %v1604, 1
        %v1610 = vperm.slane %v1604, 2
        %v1611 = vperm.slane %v1604, 3
        %v1612 = vperm.slane %v1604, 4
        %v1613 = vperm.slane %v1604, 5
        %v1614 = vperm.slane %v1604, 6
        %v1686 = vunpack.c.l.b16 %v1540
        %v1687 = vunpack.c.h.b16 %v1540
        %v1688 = vunpack.c.l.b16 %v1541
        %v1689 = vunpack.c.h.b16 %v1541
        %v1690 = vunpack.c.l.b16 %v1542
        %v1691 = vunpack.c.h.b16 %v1542
        %v1692 = vunpack.c.l.b16 %v1543
        %v1693 = vunpack.c.l.b16 %v1544
        %v1694 = vunpack.c.h.b16 %v1544
        %v1695 = vunpack.c.l.b16 %v1545
        %v1696 = vunpack.c.h.b16 %v1545
        %v1697 = vunpack.c.l.b16 %v1546
        %v1698 = vunpack.c.h.b16 %v1546
        %v1699 = vunpack.c.l.b16 %v1547
        %v1700 = vunpack.c.l.b16 %v1548
        %v1701 = vunpack.c.h.b16 %v1548
        %v1702 = vunpack.c.l.b16 %v1549
        %v1703 = vunpack.c.h.b16 %v1549
        %v1704 = vunpack.c.l.b16 %v1550
        %v1705 = vunpack.c.h.b16 %v1550
        %v1706 = vunpack.c.l.b16 %v1551
        %v1707 = vunpack.c.l.b16 %v1552
        %v1708 = vunpack.c.h.b16 %v1552
        %v1709 = vunpack.c.l.b16 %v1553
        %v1710 = vunpack.c.h.b16 %v1553
        %v1711 = vunpack.c.l.b16 %v1554
        %v1712 = vunpack.c.h.b16 %v1554
        %v1713 = vunpack.c.l.b16 %v1555
        %v1714 = vunpack.c.l.b16 %v1556
        %v1715 = vunpack.c.h.b16 %v1556
        %v1716 = vunpack.c.l.b16 %v1557
        %v1717 = vunpack.c.h.b16 %v1557
        %v1718 = vunpack.c.l.b16 %v1558
        %v1719 = vunpack.c.h.b16 %v1558
        %v1720 = vunpack.c.l.b16 %v1559
        %v1721 = vunpack.c.l.b16 %v1560
        %v1722 = vunpack.c.h.b16 %v1560
        %v1723 = vunpack.c.l.b16 %v1561
        %v1724 = vunpack.c.h.b16 %v1561
        %v1725 = vunpack.c.l.b16 %v1562
        %v1726 = vunpack.c.h.b16 %v1562
        %v1727 = vunpack.c.l.b16 %v1563
        %v1728 = vunpack.c.l.b16 %v1564
        %v1729 = vunpack.c.h.b16 %v1564
        %v1730 = vunpack.c.l.b16 %v1565
        %v1731 = vunpack.c.h.b16 %v1565
        %v1732 = vunpack.c.l.b16 %v1566
        %v1733 = vunpack.c.h.b16 %v1566
        %v1734 = vunpack.c.l.b16 %v1567
        %v1735 = vunpack.c.l.b16 %v1568
        %v1736 = vunpack.c.h.b16 %v1568
        %v1737 = vunpack.c.l.b16 %v1569
        %v1738 = vunpack.c.h.b16 %v1569
        %v1739 = vunpack.c.l.b16 %v1570
        %v1740 = vunpack.c.h.b16 %v1570
        %v1741 = vunpack.c.l.b16 %v1571
        %v1742 = vunpack.c.l.b16 %v1572
        %v1743 = vunpack.c.h.b16 %v1572
        %v1744 = vunpack.c.l.b16 %v1573
        %v1745 = vunpack.c.h.b16 %v1573
        %v1746 = vunpack.c.l.b16 %v1574
        %v1747 = vunpack.c.h.b16 %v1574
        %v1748 = vunpack.c.l.b16 %v1575
        %v1749 = vunpack.c.l.b16 %v1576
        %v1750 = vunpack.c.h.b16 %v1576
        %v1751 = vunpack.c.l.b16 %v1577
        %v1752 = vunpack.c.h.b16 %v1577
        %v1753 = vunpack.c.l.b16 %v1578
        %v1754 = vunpack.c.h.b16 %v1578
        %v1755 = vunpack.c.l.b16 %v1579
        %v1756 = vunpack.c.l.b16 %v1580
        %v1757 = vunpack.c.h.b16 %v1580
        %v1758 = vunpack.c.l.b16 %v1581
        %v1759 = vunpack.c.h.b16 %v1581
        %v1760 = vunpack.c.l.b16 %v1582
        %v1761 = vunpack.c.h.b16 %v1582
        %v1762 = vunpack.c.l.b16 %v1583
        %v1763 = vunpack.c.l.b16 %v1584
        %v1764 = vunpack.c.h.b16 %v1584
        %v1765 = vunpack.c.l.b16 %v1585
        %v1766 = vunpack.c.h.b16 %v1585
        %v1767 = vunpack.c.l.b16 %v1586
        %v1768 = vunpack.c.h.b16 %v1586
        %v1769 = vunpack.c.l.b16 %v1587
        %v1770 = vunpack.c.l.b16 %v1588
        %v1771 = vunpack.c.h.b16 %v1588
        %v1772 = vunpack.c.l.b16 %v1589
        %v1773 = vunpack.c.h.b16 %v1589
        %v1774 = vunpack.c.l.b16 %v1590
        %v1775 = vunpack.c.h.b16 %v1590
        %v1776 = vunpack.c.l.b16 %v1591
        %v1777 = vunpack.c.l.b16 %v1592
        %v1778 = vunpack.c.h.b16 %v1592
        %v1779 = vunpack.c.l.b16 %v1593
        %v1780 = vunpack.c.h.b16 %v1593
        %v1781 = vunpack.c.l.b16 %v1594
        %v1782 = vunpack.c.h.b16 %v1594
        %v1783 = vunpack.c.l.b16 %v1595
        %v1784 = vunpack.c.l.b16 %v1596
        %v1785 = vunpack.c.h.b16 %v1596
        %v1786 = vunpack.c.l.b16 %v1597
        %v1787 = vunpack.c.h.b16 %v1597
        %v1788 = vunpack.c.l.b16 %v1598
        %v1789 = vunpack.c.h.b16 %v1598
        %v1790 = vunpack.c.l.b16 %v1599
        %v1791 = vunpack.c.l.b16 %v1600
        %v1792 = vunpack.c.h.b16 %v1600
        %v1793 = vunpack.c.l.b16 %v1601
        %v1794 = vunpack.c.h.b16 %v1601
        %v1795 = vunpack.c.l.b16 %v1602
        %v1796 = vunpack.c.h.b16 %v1602
        %v1797 = vunpack.c.l.b16 %v1603
        %v1798 = vpack.c.b16 %v1693, %v1686
        %v1799 = vpack.c.b16 %v1694, %v1687
        %v1800 = vpack.c.b16 %v1695, %v1688
        %v1801 = vpack.c.b16 %v1696, %v1689
        %v1802 = vpack.c.b16 %v1697, %v1690
        %v1803 = vpack.c.b16 %v1698, %v1691
        %v1804 = vpack.c.b16 %v1699, %v1692
        %v1805 = vpack.c.b16 %v1707, %v1700
        %v1806 = vpack.c.b16 %v1708, %v1701
        %v1807 = vpack.c.b16 %v1709, %v1702
        %v1808 = vpack.c.b16 %v1710, %v1703
        %v1809 = vpack.c.b16 %v1711, %v1704
        %v1810 = vpack.c.b16 %v1712, %v1705
        %v1811 = vpack.c.b16 %v1713, %v1706
        %v1812 = vpack.c.b16 %v1721, %v1714
        %v1813 = vpack.c.b16 %v1722, %v1715
        %v1814 = vpack.c.b16 %v1723, %v1716
        %v1815 = vpack.c.b16 %v1724, %v1717
        %v1816 = vpack.c.b16 %v1725, %v1718
        %v1817 = vpack.c.b16 %v1726, %v1719
        %v1818 = vpack.c.b16 %v1727, %v1720
        %v1819 = vpack.c.b16 %v1735, %v1728
        %v1820 = vpack.c.b16 %v1736, %v1729
        %v1821 = vpack.c.b16 %v1737, %v1730
        %v1822 = vpack.c.b16 %v1738, %v1731
        %v1823 = vpack.c.b16 %v1739, %v1732
        %v1824 = vpack.c.b16 %v1740, %v1733
        %v1825 = vpack.c.b16 %v1741, %v1734
        %v1826 = vpack.c.b16 %v1749, %v1742
        %v1827 = vpack.c.b16 %v1750, %v1743
        %v1828 = vpack.c.b16 %v1751, %v1744
        %v1829 = vpack.c.b16 %v1752, %v1745
        %v1830 = vpack.c.b16 %v1753, %v1746
        %v1831 = vpack.c.b16 %v1754, %v1747
        %v1832 = vpack.c.b16 %v1755, %v1748
        %v1833 = vpack.c.b16 %v1763, %v1756
        %v1834 = vpack.c.b16 %v1764, %v1757
        %v1835 = vpack.c.b16 %v1765, %v1758
        %v1836 = vpack.c.b16 %v1766, %v1759
        %v1837 = vpack.c.b16 %v1767, %v1760
        %v1838 = vpack.c.b16 %v1768, %v1761
        %v1839 = vpack.c.b16 %v1769, %v1762
        %v1840 = vpack.c.b16 %v1777, %v1770
        %v1841 = vpack.c.b16 %v1778, %v1771
        %v1842 = vpack.c.b16 %v1779, %v1772
        %v1843 = vpack.c.b16 %v1780, %v1773
        %v1844 = vpack.c.b16 %v1781, %v1774
        %v1845 = vpack.c.b16 %v1782, %v1775
        %v1846 = vpack.c.b16 %v1783, %v1776
        %v1847 = vpack.c.b16 %v1791, %v1784
        %v1848 = vpack.c.b16 %v1792, %v1785
        %v1849 = vpack.c.b16 %v1793, %v1786
        %v1850 = vpack.c.b16 %v1794, %v1787
        %v1851 = vpack.c.b16 %v1795, %v1788
        %v1852 = vpack.c.b16 %v1796, %v1789
        %v1853 = vpack.c.b16 %v1797, %v1790
        %1910 = vmatpush.bf16.msra.mxu0 %v1847
        %1911 = vmatpush.bf16.msra.mxu0 %v1840
        %1912 = vmatpush.bf16.msra.mxu0 %v1833
        %1913 = vmatpush.bf16.msra.mxu0 %v1826
        %1914 = vmatpush.bf16.msra.mxu0 %v1819
        %1915 = vmatpush.bf16.msra.mxu0 %v1812
        %1916 = vmatpush.bf16.msra.mxu0 %v1805
        %1917 = vmatpush.bf16.msra.mxu0 %v1798
        %1918 = vmatmul.bf16.gmra.mxu0 %v1605
        %v1919 = vpop.f32.mrf.mxu0
        %v1920 = vadd.f32 %v1608, %v1919
        %v1921 = vpop.f32.mrf.mxu0
        %v1922 = vadd.f32 %v1608, %v1921
        %1923 = vmatmul.bf16.gmra.mxu0 %v1606
        %v1924 = vpop.f32.mrf.mxu0
        %v1925 = vadd.f32 %v1608, %v1924
        %v1926 = vpop.f32.mrf.mxu0
        %v1927 = vadd.f32 %v1608, %v1926
        %1928 = vdwg.mxu0
        %1929 = vmatpush.bf16.msra.mxu0 %v1848
        %1930 = vmatpush.bf16.msra.mxu0 %v1841
        %1931 = vmatpush.bf16.msra.mxu0 %v1834
        %1932 = vmatpush.bf16.msra.mxu0 %v1827
        %1933 = vmatpush.bf16.msra.mxu0 %v1820
        %1934 = vmatpush.bf16.msra.mxu0 %v1813
        %1935 = vmatpush.bf16.msra.mxu0 %v1806
        %1936 = vmatpush.bf16.msra.mxu0 %v1799
        %1937 = vmatmul.bf16.gmra.mxu0 %v1605
        %v1938 = vpop.f32.mrf.mxu0
        %v1939 = vadd.f32 %v1609, %v1938
        %v1940 = vpop.f32.mrf.mxu0
        %v1941 = vadd.f32 %v1609, %v1940
        %1942 = vmatmul.bf16.gmra.mxu0 %v1606
        %v1943 = vpop.f32.mrf.mxu0
        %v1944 = vadd.f32 %v1609, %v1943
        %v1945 = vpop.f32.mrf.mxu0
        %v1946 = vadd.f32 %v1609, %v1945
        %1947 = vdwg.mxu0
        %1948 = vmatpush.bf16.msra.mxu0 %v1849
        %1949 = vmatpush.bf16.msra.mxu0 %v1842
        %1950 = vmatpush.bf16.msra.mxu0 %v1835
        %1951 = vmatpush.bf16.msra.mxu0 %v1828
        %1952 = vmatpush.bf16.msra.mxu0 %v1821
        %1953 = vmatpush.bf16.msra.mxu0 %v1814
        %1954 = vmatpush.bf16.msra.mxu0 %v1807
        %1955 = vmatpush.bf16.msra.mxu0 %v1800
        %1956 = vmatmul.bf16.gmra.mxu0 %v1605
        %v1957 = vpop.f32.mrf.mxu0
        %v1958 = vadd.f32 %v1610, %v1957
        %v1959 = vpop.f32.mrf.mxu0
        %v1960 = vadd.f32 %v1610, %v1959
        %1961 = vmatmul.bf16.gmra.mxu0 %v1606
        %v1962 = vpop.f32.mrf.mxu0
        %v1963 = vadd.f32 %v1610, %v1962
        %v1964 = vpop.f32.mrf.mxu0
        %v1965 = vadd.f32 %v1610, %v1964
        %1966 = vdwg.mxu0
        %1967 = vmatpush.bf16.msra.mxu0 %v1850
        %1968 = vmatpush.bf16.msra.mxu0 %v1843
        %1969 = vmatpush.bf16.msra.mxu0 %v1836
        %1970 = vmatpush.bf16.msra.mxu0 %v1829
        %1971 = vmatpush.bf16.msra.mxu0 %v1822
        %1972 = vmatpush.bf16.msra.mxu0 %v1815
        %1973 = vmatpush.bf16.msra.mxu0 %v1808
        %1974 = vmatpush.bf16.msra.mxu0 %v1801
        %1975 = vmatmul.bf16.gmra.mxu0 %v1605
        %v1976 = vpop.f32.mrf.mxu0
        %v1977 = vadd.f32 %v1611, %v1976
        %v1978 = vpop.f32.mrf.mxu0
        %v1979 = vadd.f32 %v1611, %v1978
        %1980 = vmatmul.bf16.gmra.mxu0 %v1606
        %v1981 = vpop.f32.mrf.mxu0
        %v1982 = vadd.f32 %v1611, %v1981
        %v1983 = vpop.f32.mrf.mxu0
        %v1984 = vadd.f32 %v1611, %v1983
        %1985 = vdwg.mxu0
        %1986 = vmatpush.bf16.msra.mxu0 %v1851
        %1987 = vmatpush.bf16.msra.mxu0 %v1844
        %1988 = vmatpush.bf16.msra.mxu0 %v1837
        %1989 = vmatpush.bf16.msra.mxu0 %v1830
        %1990 = vmatpush.bf16.msra.mxu0 %v1823
        %1991 = vmatpush.bf16.msra.mxu0 %v1816
        %1992 = vmatpush.bf16.msra.mxu0 %v1809
        %1993 = vmatpush.bf16.msra.mxu0 %v1802
        %1994 = vmatmul.bf16.gmra.mxu0 %v1605
        %v1995 = vpop.f32.mrf.mxu0
        %v1996 = vadd.f32 %v1612, %v1995
        %v1997 = vpop.f32.mrf.mxu0
        %v1998 = vadd.f32 %v1612, %v1997
        %1999 = vmatmul.bf16.gmra.mxu0 %v1606
        %v2000 = vpop.f32.mrf.mxu0
        %v2001 = vadd.f32 %v1612, %v2000
        %v2002 = vpop.f32.mrf.mxu0
        %v2003 = vadd.f32 %v1612, %v2002
        %2004 = vdwg.mxu0
        %2005 = vmatpush.bf16.msra.mxu0 %v1852
        %2006 = vmatpush.bf16.msra.mxu0 %v1845
        %2007 = vmatpush.bf16.msra.mxu0 %v1838
        %2008 = vmatpush.bf16.msra.mxu0 %v1831
        %2009 = vmatpush.bf16.msra.mxu0 %v1824
        %2010 = vmatpush.bf16.msra.mxu0 %v1817
        %2011 = vmatpush.bf16.msra.mxu0 %v1810
        %2012 = vmatpush.bf16.msra.mxu0 %v1803
        %2013 = vmatmul.bf16.gmra.mxu0 %v1605
        %v2014 = vpop.f32.mrf.mxu0
        %v2015 = vadd.f32 %v1613, %v2014
        %v2016 = vpop.f32.mrf.mxu0
        %v2017 = vadd.f32 %v1613, %v2016
        %2018 = vmatmul.bf16.gmra.mxu0 %v1606
        %v2019 = vpop.f32.mrf.mxu0
        %v2020 = vadd.f32 %v1613, %v2019
        %v2021 = vpop.f32.mrf.mxu0
        %v2022 = vadd.f32 %v1613, %v2021
        %2023 = vdwg.mxu0
        %2024 = vmatpush.bf16.msra.mxu0 %v1853
        %2025 = vmatpush.bf16.msra.mxu0 %v1846
        %2026 = vmatpush.bf16.msra.mxu0 %v1839
        %2027 = vmatpush.bf16.msra.mxu0 %v1832
        %2028 = vmatpush.bf16.msra.mxu0 %v1825
        %2029 = vmatpush.bf16.msra.mxu0 %v1818
        %2030 = vmatpush.bf16.msra.mxu0 %v1811
        %2031 = vmatpush.bf16.msra.mxu0 %v1804
        %2032 = vmatmul.bf16.gmra.mxu0 %v1605
        %v2033 = vpop.f32.mrf.mxu0
        %v2034 = vadd.f32 %v1614, %v2033
        %v2035 = vpop.f32.mrf.mxu0
        %v2036 = vadd.f32 %v1614, %v2035
        %2037 = vmatmul.bf16.gmra.mxu0 %v1606
        %v2038 = vpop.f32.mrf.mxu0
        %v2039 = vadd.f32 %v1614, %v2038
        %v2040 = vpop.f32.mrf.mxu0
        %v2041 = vadd.f32 %v1614, %v2040
        %2042 = vdwg.mxu0
        %v2043 = vxor.u32 %v1920, 2147483648
        %v2044 = vxor.u32 %v1939, 2147483648
        %v2045 = vxor.u32 %v1958, 2147483648
        %v2046 = vxor.u32 %v1977, 2147483648
        %v2047 = vxor.u32 %v1996, 2147483648
        %v2048 = vxor.u32 %v2015, 2147483648
        %v2049 = vxor.u32 %v2034, 2147483648
        %v2050 = vxor.u32 %v1922, 2147483648
        %v2051 = vxor.u32 %v1941, 2147483648
        %v2052 = vxor.u32 %v1960, 2147483648
        %v2053 = vxor.u32 %v1979, 2147483648
        %v2054 = vxor.u32 %v1998, 2147483648
        %v2055 = vxor.u32 %v2017, 2147483648
        %v2056 = vxor.u32 %v2036, 2147483648
        %v2057 = vxor.u32 %v1925, 2147483648
        %v2058 = vxor.u32 %v1944, 2147483648
        %v2059 = vxor.u32 %v1963, 2147483648
        %v2060 = vxor.u32 %v1982, 2147483648
        %v2061 = vxor.u32 %v2001, 2147483648
        %v2062 = vxor.u32 %v2020, 2147483648
        %v2063 = vxor.u32 %v2039, 2147483648
        %v2064 = vxor.u32 %v1927, 2147483648
        %v2065 = vxor.u32 %v1946, 2147483648
        %v2066 = vxor.u32 %v1965, 2147483648
        %v2067 = vxor.u32 %v1984, 2147483648
        %v2068 = vxor.u32 %v2003, 2147483648
        %v2069 = vxor.u32 %v2022, 2147483648
        %v2070 = vxor.u32 %v2041, 2147483648
        %v2071 = vmul.f32 %v2043, 1.442695
        %v2072 = vpow.pop %v2071
        %v2073 = vmul.f32 %v2044, 1.442695
        %v2074 = vpow.pop %v2073
        %v2075 = vmul.f32 %v2045, 1.442695
        %v2076 = vpow.pop %v2075
        %v2077 = vmul.f32 %v2046, 1.442695
        %v2078 = vpow.pop %v2077
        %v2079 = vmul.f32 %v2047, 1.442695
        %v2080 = vpow.pop %v2079
        %v2081 = vmul.f32 %v2048, 1.442695
        %v2082 = vpow.pop %v2081
        %v2083 = vmul.f32 %v2049, 1.442695
        %v2084 = vpow.pop %v2083
        %v2085 = vmul.f32 %v2050, 1.442695
        %v2086 = vpow.pop %v2085
        %v2087 = vmul.f32 %v2051, 1.442695
        %v2088 = vpow.pop %v2087
        %v2089 = vmul.f32 %v2052, 1.442695
        %v2090 = vpow.pop %v2089
        %v2091 = vmul.f32 %v2053, 1.442695
        %v2092 = vpow.pop %v2091
        %v2093 = vmul.f32 %v2054, 1.442695
        %v2094 = vpow.pop %v2093
        %v2095 = vmul.f32 %v2055, 1.442695
        %v2096 = vpow.pop %v2095
        %v2097 = vmul.f32 %v2056, 1.442695
        %v2098 = vpow.pop %v2097
        %v2099 = vmul.f32 %v2057, 1.442695
        %v2100 = vpow.pop %v2099
        %v2101 = vmul.f32 %v2058, 1.442695
        %v2102 = vpow.pop %v2101
        %v2103 = vmul.f32 %v2059, 1.442695
        %v2104 = vpow.pop %v2103
        %v2105 = vmul.f32 %v2060, 1.442695
        %v2106 = vpow.pop %v2105
        %v2107 = vmul.f32 %v2061, 1.442695
        %v2108 = vpow.pop %v2107
        %v2109 = vmul.f32 %v2062, 1.442695
        %v2110 = vpow.pop %v2109
        %v2111 = vmul.f32 %v2063, 1.442695
        %v2112 = vpow.pop %v2111
        %v2113 = vmul.f32 %v2064, 1.442695
        %v2114 = vpow.pop %v2113
        %v2115 = vmul.f32 %v2065, 1.442695
        %v2116 = vpow.pop %v2115
        %v2117 = vmul.f32 %v2066, 1.442695
        %v2118 = vpow.pop %v2117
        %v2119 = vmul.f32 %v2067, 1.442695
        %v2120 = vpow.pop %v2119
        %v2121 = vmul.f32 %v2068, 1.442695
        %v2122 = vpow.pop %v2121
        %v2123 = vmul.f32 %v2069, 1.442695
        %v2124 = vpow.pop %v2123
        %v2125 = vmul.f32 %v2070, 1.442695
        %v2126 = vpow.pop %v2125
        %v2127 = vadd.f32 %v2072, 1.0
        %v2128 = vadd.f32 %v2074, 1.0
        %v2129 = vadd.f32 %v2076, 1.0
        %v2130 = vadd.f32 %v2078, 1.0
        %v2131 = vadd.f32 %v2080, 1.0
        %v2132 = vadd.f32 %v2082, 1.0
        %v2133 = vadd.f32 %v2084, 1.0
        %v2134 = vadd.f32 %v2086, 1.0
        %v2135 = vadd.f32 %v2088, 1.0
        %v2136 = vadd.f32 %v2090, 1.0
        %v2137 = vadd.f32 %v2092, 1.0
        %v2138 = vadd.f32 %v2094, 1.0
        %v2139 = vadd.f32 %v2096, 1.0
        %v2140 = vadd.f32 %v2098, 1.0
        %v2141 = vadd.f32 %v2100, 1.0
        %v2142 = vadd.f32 %v2102, 1.0
        %v2143 = vadd.f32 %v2104, 1.0
        %v2144 = vadd.f32 %v2106, 1.0
        %v2145 = vadd.f32 %v2108, 1.0
        %v2146 = vadd.f32 %v2110, 1.0
        %v2147 = vadd.f32 %v2112, 1.0
        %v2148 = vadd.f32 %v2114, 1.0
        %v2149 = vadd.f32 %v2116, 1.0
        %v2150 = vadd.f32 %v2118, 1.0
        %v2151 = vadd.f32 %v2120, 1.0
        %v2152 = vadd.f32 %v2122, 1.0
        %v2153 = vadd.f32 %v2124, 1.0
        %v2154 = vadd.f32 %v2126, 1.0
        %v2155 = vrcp.pop %v2127
        %v2156 = vmul.f32 %v2127, %v2155
        %v2157 = vsub.f32 1.0, %v2156
        %v2158 = vmul.f32 %v2155, %v2157
        %v2159 = vadd.f32 %v2155, %v2158
        %vm2160 = vweird.f32 %v2127
        %vm2161 = vweird.f32 %v2155
        %vm2162 = vmor %vm2160, %vm2161
        %v2163 = vsel %vm2162, %v2155, %v2159
        %v2164 = vand.u32 2147483647, %v2127
        %vm2165 = vcmp.eq.f32.partialorder %v2164, 8.507059e+37
        %v2166 = vand.u32 %v2127, 2147483648
        %v2167 = vor.u32 1.1754944e-38, %v2166
        %v2168 = vsel %vm2165, %v2167, %v2163
        %v2169 = vmul.f32 1.0, %v2168
        %v2170 = vrcp.pop %v2128
        %v2171 = vmul.f32 %v2128, %v2170
        %v2172 = vsub.f32 1.0, %v2171
        %v2173 = vmul.f32 %v2170, %v2172
        %v2174 = vadd.f32 %v2170, %v2173
        %vm2175 = vweird.f32 %v2128
        %vm2176 = vweird.f32 %v2170
        %vm2177 = vmor %vm2175, %vm2176
        %v2178 = vsel %vm2177, %v2170, %v2174
        %v2179 = vand.u32 2147483647, %v2128
        %vm2180 = vcmp.eq.f32.partialorder %v2179, 8.507059e+37
        %v2181 = vand.u32 %v2128, 2147483648
        %v2182 = vor.u32 1.1754944e-38, %v2181
        %v2183 = vsel %vm2180, %v2182, %v2178
        %v2184 = vmul.f32 1.0, %v2183
        %v2185 = vrcp.pop %v2129
        %v2186 = vmul.f32 %v2129, %v2185
        %v2187 = vsub.f32 1.0, %v2186
        %v2188 = vmul.f32 %v2185, %v2187
        %v2189 = vadd.f32 %v2185, %v2188
        %vm2190 = vweird.f32 %v2129
        %vm2191 = vweird.f32 %v2185
        %vm2192 = vmor %vm2190, %vm2191
        %v2193 = vsel %vm2192, %v2185, %v2189
        %v2194 = vand.u32 2147483647, %v2129
        %vm2195 = vcmp.eq.f32.partialorder %v2194, 8.507059e+37
        %v2196 = vand.u32 %v2129, 2147483648
        %v2197 = vor.u32 1.1754944e-38, %v2196
        %v2198 = vsel %vm2195, %v2197, %v2193
        %v2199 = vmul.f32 1.0, %v2198
        %v2200 = vrcp.pop %v2130
        %v2201 = vmul.f32 %v2130, %v2200
        %v2202 = vsub.f32 1.0, %v2201
        %v2203 = vmul.f32 %v2200, %v2202
        %v2204 = vadd.f32 %v2200, %v2203
        %vm2205 = vweird.f32 %v2130
        %vm2206 = vweird.f32 %v2200
        %vm2207 = vmor %vm2205, %vm2206
        %v2208 = vsel %vm2207, %v2200, %v2204
        %v2209 = vand.u32 2147483647, %v2130
        %vm2210 = vcmp.eq.f32.partialorder %v2209, 8.507059e+37
        %v2211 = vand.u32 %v2130, 2147483648
        %v2212 = vor.u32 1.1754944e-38, %v2211
        %v2213 = vsel %vm2210, %v2212, %v2208
        %v2214 = vmul.f32 1.0, %v2213
        %v2215 = vrcp.pop %v2131
        %v2216 = vmul.f32 %v2131, %v2215
        %v2217 = vsub.f32 1.0, %v2216
        %v2218 = vmul.f32 %v2215, %v2217
        %v2219 = vadd.f32 %v2215, %v2218
        %vm2220 = vweird.f32 %v2131
        %vm2221 = vweird.f32 %v2215
        %vm2222 = vmor %vm2220, %vm2221
        %v2223 = vsel %vm2222, %v2215, %v2219
        %v2224 = vand.u32 2147483647, %v2131
        %vm2225 = vcmp.eq.f32.partialorder %v2224, 8.507059e+37
        %v2226 = vand.u32 %v2131, 2147483648
        %v2227 = vor.u32 1.1754944e-38, %v2226
        %v2228 = vsel %vm2225, %v2227, %v2223
        %v2229 = vmul.f32 1.0, %v2228
        %v2230 = vrcp.pop %v2132
        %v2231 = vmul.f32 %v2132, %v2230
        %v2232 = vsub.f32 1.0, %v2231
        %v2233 = vmul.f32 %v2230, %v2232
        %v2234 = vadd.f32 %v2230, %v2233
        %vm2235 = vweird.f32 %v2132
        %vm2236 = vweird.f32 %v2230
        %vm2237 = vmor %vm2235, %vm2236
        %v2238 = vsel %vm2237, %v2230, %v2234
        %v2239 = vand.u32 2147483647, %v2132
        %vm2240 = vcmp.eq.f32.partialorder %v2239, 8.507059e+37
        %v2241 = vand.u32 %v2132, 2147483648
        %v2242 = vor.u32 1.1754944e-38, %v2241
        %v2243 = vsel %vm2240, %v2242, %v2238
        %v2244 = vmul.f32 1.0, %v2243
        %v2245 = vrcp.pop %v2133
        %v2246 = vmul.f32 %v2133, %v2245
        %v2247 = vsub.f32 1.0, %v2246
        %v2248 = vmul.f32 %v2245, %v2247
        %v2249 = vadd.f32 %v2245, %v2248
        %vm2250 = vweird.f32 %v2133
        %vm2251 = vweird.f32 %v2245
        %vm2252 = vmor %vm2250, %vm2251
        %v2253 = vsel %vm2252, %v2245, %v2249
        %v2254 = vand.u32 2147483647, %v2133
        %vm2255 = vcmp.eq.f32.partialorder %v2254, 8.507059e+37
        %v2256 = vand.u32 %v2133, 2147483648
        %v2257 = vor.u32 1.1754944e-38, %v2256
        %v2258 = vsel %vm2255, %v2257, %v2253
        %v2259 = vmul.f32 1.0, %v2258
        %v2260 = vrcp.pop %v2134
        %v2261 = vmul.f32 %v2134, %v2260
        %v2262 = vsub.f32 1.0, %v2261
        %v2263 = vmul.f32 %v2260, %v2262
        %v2264 = vadd.f32 %v2260, %v2263
        %vm2265 = vweird.f32 %v2134
        %vm2266 = vweird.f32 %v2260
        %vm2267 = vmor %vm2265, %vm2266
        %v2268 = vsel %vm2267, %v2260, %v2264
        %v2269 = vand.u32 2147483647, %v2134
        %vm2270 = vcmp.eq.f32.partialorder %v2269, 8.507059e+37
        %v2271 = vand.u32 %v2134, 2147483648
        %v2272 = vor.u32 1.1754944e-38, %v2271
        %v2273 = vsel %vm2270, %v2272, %v2268
        %v2274 = vmul.f32 1.0, %v2273
        %v2275 = vrcp.pop %v2135
        %v2276 = vmul.f32 %v2135, %v2275
        %v2277 = vsub.f32 1.0, %v2276
        %v2278 = vmul.f32 %v2275, %v2277
        %v2279 = vadd.f32 %v2275, %v2278
        %vm2280 = vweird.f32 %v2135
        %vm2281 = vweird.f32 %v2275
        %vm2282 = vmor %vm2280, %vm2281
        %v2283 = vsel %vm2282, %v2275, %v2279
        %v2284 = vand.u32 2147483647, %v2135
        %vm2285 = vcmp.eq.f32.partialorder %v2284, 8.507059e+37
        %v2286 = vand.u32 %v2135, 2147483648
        %v2287 = vor.u32 1.1754944e-38, %v2286
        %v2288 = vsel %vm2285, %v2287, %v2283
        %v2289 = vmul.f32 1.0, %v2288
        %v2290 = vrcp.pop %v2136
        %v2291 = vmul.f32 %v2136, %v2290
        %v2292 = vsub.f32 1.0, %v2291
        %v2293 = vmul.f32 %v2290, %v2292
        %v2294 = vadd.f32 %v2290, %v2293
        %vm2295 = vweird.f32 %v2136
        %vm2296 = vweird.f32 %v2290
        %vm2297 = vmor %vm2295, %vm2296
        %v2298 = vsel %vm2297, %v2290, %v2294
        %v2299 = vand.u32 2147483647, %v2136
        %vm2300 = vcmp.eq.f32.partialorder %v2299, 8.507059e+37
        %v2301 = vand.u32 %v2136, 2147483648
        %v2302 = vor.u32 1.1754944e-38, %v2301
        %v2303 = vsel %vm2300, %v2302, %v2298
        %v2304 = vmul.f32 1.0, %v2303
        %v2305 = vrcp.pop %v2137
        %v2306 = vmul.f32 %v2137, %v2305
        %v2307 = vsub.f32 1.0, %v2306
        %v2308 = vmul.f32 %v2305, %v2307
        %v2309 = vadd.f32 %v2305, %v2308
        %vm2310 = vweird.f32 %v2137
        %vm2311 = vweird.f32 %v2305
        %vm2312 = vmor %vm2310, %vm2311
        %v2313 = vsel %vm2312, %v2305, %v2309
        %v2314 = vand.u32 2147483647, %v2137
        %vm2315 = vcmp.eq.f32.partialorder %v2314, 8.507059e+37
        %v2316 = vand.u32 %v2137, 2147483648
        %v2317 = vor.u32 1.1754944e-38, %v2316
        %v2318 = vsel %vm2315, %v2317, %v2313
        %v2319 = vmul.f32 1.0, %v2318
        %v2320 = vrcp.pop %v2138
        %v2321 = vmul.f32 %v2138, %v2320
        %v2322 = vsub.f32 1.0, %v2321
        %v2323 = vmul.f32 %v2320, %v2322
        %v2324 = vadd.f32 %v2320, %v2323
        %vm2325 = vweird.f32 %v2138
        %vm2326 = vweird.f32 %v2320
        %vm2327 = vmor %vm2325, %vm2326
        %v2328 = vsel %vm2327, %v2320, %v2324
        %v2329 = vand.u32 2147483647, %v2138
        %vm2330 = vcmp.eq.f32.partialorder %v2329, 8.507059e+37
        %v2331 = vand.u32 %v2138, 2147483648
        %v2332 = vor.u32 1.1754944e-38, %v2331
        %v2333 = vsel %vm2330, %v2332, %v2328
        %v2334 = vmul.f32 1.0, %v2333
        %v2335 = vrcp.pop %v2139
        %v2336 = vmul.f32 %v2139, %v2335
        %v2337 = vsub.f32 1.0, %v2336
        %v2338 = vmul.f32 %v2335, %v2337
        %v2339 = vadd.f32 %v2335, %v2338
        %vm2340 = vweird.f32 %v2139
        %vm2341 = vweird.f32 %v2335
        %vm2342 = vmor %vm2340, %vm2341
        %v2343 = vsel %vm2342, %v2335, %v2339
        %v2344 = vand.u32 2147483647, %v2139
        %vm2345 = vcmp.eq.f32.partialorder %v2344, 8.507059e+37
        %v2346 = vand.u32 %v2139, 2147483648
        %v2347 = vor.u32 1.1754944e-38, %v2346
        %v2348 = vsel %vm2345, %v2347, %v2343
        %v2349 = vmul.f32 1.0, %v2348
        %v2350 = vrcp.pop %v2140
        %v2351 = vmul.f32 %v2140, %v2350
        %v2352 = vsub.f32 1.0, %v2351
        %v2353 = vmul.f32 %v2350, %v2352
        %v2354 = vadd.f32 %v2350, %v2353
        %vm2355 = vweird.f32 %v2140
        %vm2356 = vweird.f32 %v2350
        %vm2357 = vmor %vm2355, %vm2356
        %v2358 = vsel %vm2357, %v2350, %v2354
        %v2359 = vand.u32 2147483647, %v2140
        %vm2360 = vcmp.eq.f32.partialorder %v2359, 8.507059e+37
        %v2361 = vand.u32 %v2140, 2147483648
        %v2362 = vor.u32 1.1754944e-38, %v2361
        %v2363 = vsel %vm2360, %v2362, %v2358
        %v2364 = vmul.f32 1.0, %v2363
        %v2365 = vrcp.pop %v2141
        %v2366 = vmul.f32 %v2141, %v2365
        %v2367 = vsub.f32 1.0, %v2366
        %v2368 = vmul.f32 %v2365, %v2367
        %v2369 = vadd.f32 %v2365, %v2368
        %vm2370 = vweird.f32 %v2141
        %vm2371 = vweird.f32 %v2365
        %vm2372 = vmor %vm2370, %vm2371
        %v2373 = vsel %vm2372, %v2365, %v2369
        %v2374 = vand.u32 2147483647, %v2141
        %vm2375 = vcmp.eq.f32.partialorder %v2374, 8.507059e+37
        %v2376 = vand.u32 %v2141, 2147483648
        %v2377 = vor.u32 1.1754944e-38, %v2376
        %v2378 = vsel %vm2375, %v2377, %v2373
        %v2379 = vmul.f32 1.0, %v2378
        %v2380 = vrcp.pop %v2142
        %v2381 = vmul.f32 %v2142, %v2380
        %v2382 = vsub.f32 1.0, %v2381
        %v2383 = vmul.f32 %v2380, %v2382
        %v2384 = vadd.f32 %v2380, %v2383
        %vm2385 = vweird.f32 %v2142
        %vm2386 = vweird.f32 %v2380
        %vm2387 = vmor %vm2385, %vm2386
        %v2388 = vsel %vm2387, %v2380, %v2384
        %v2389 = vand.u32 2147483647, %v2142
        %vm2390 = vcmp.eq.f32.partialorder %v2389, 8.507059e+37
        %v2391 = vand.u32 %v2142, 2147483648
        %v2392 = vor.u32 1.1754944e-38, %v2391
        %v2393 = vsel %vm2390, %v2392, %v2388
        %v2394 = vmul.f32 1.0, %v2393
        %v2395 = vrcp.pop %v2143
        %v2396 = vmul.f32 %v2143, %v2395
        %v2397 = vsub.f32 1.0, %v2396
        %v2398 = vmul.f32 %v2395, %v2397
        %v2399 = vadd.f32 %v2395, %v2398
        %vm2400 = vweird.f32 %v2143
        %vm2401 = vweird.f32 %v2395
        %vm2402 = vmor %vm2400, %vm2401
        %v2403 = vsel %vm2402, %v2395, %v2399
        %v2404 = vand.u32 2147483647, %v2143
        %vm2405 = vcmp.eq.f32.partialorder %v2404, 8.507059e+37
        %v2406 = vand.u32 %v2143, 2147483648
        %v2407 = vor.u32 1.1754944e-38, %v2406
        %v2408 = vsel %vm2405, %v2407, %v2403
        %v2409 = vmul.f32 1.0, %v2408
        %v2410 = vrcp.pop %v2144
        %v2411 = vmul.f32 %v2144, %v2410
        %v2412 = vsub.f32 1.0, %v2411
        %v2413 = vmul.f32 %v2410, %v2412
        %v2414 = vadd.f32 %v2410, %v2413
        %vm2415 = vweird.f32 %v2144
        %vm2416 = vweird.f32 %v2410
        %vm2417 = vmor %vm2415, %vm2416
        %v2418 = vsel %vm2417, %v2410, %v2414
        %v2419 = vand.u32 2147483647, %v2144
        %vm2420 = vcmp.eq.f32.partialorder %v2419, 8.507059e+37
        %v2421 = vand.u32 %v2144, 2147483648
        %v2422 = vor.u32 1.1754944e-38, %v2421
        %v2423 = vsel %vm2420, %v2422, %v2418
        %v2424 = vmul.f32 1.0, %v2423
        %v2425 = vrcp.pop %v2145
        %v2426 = vmul.f32 %v2145, %v2425
        %v2427 = vsub.f32 1.0, %v2426
        %v2428 = vmul.f32 %v2425, %v2427
        %v2429 = vadd.f32 %v2425, %v2428
        %vm2430 = vweird.f32 %v2145
        %vm2431 = vweird.f32 %v2425
        %vm2432 = vmor %vm2430, %vm2431
        %v2433 = vsel %vm2432, %v2425, %v2429
        %v2434 = vand.u32 2147483647, %v2145
        %vm2435 = vcmp.eq.f32.partialorder %v2434, 8.507059e+37
        %v2436 = vand.u32 %v2145, 2147483648
        %v2437 = vor.u32 1.1754944e-38, %v2436
        %v2438 = vsel %vm2435, %v2437, %v2433
        %v2439 = vmul.f32 1.0, %v2438
        %v2440 = vrcp.pop %v2146
        %v2441 = vmul.f32 %v2146, %v2440
        %v2442 = vsub.f32 1.0, %v2441
        %v2443 = vmul.f32 %v2440, %v2442
        %v2444 = vadd.f32 %v2440, %v2443
        %vm2445 = vweird.f32 %v2146
        %vm2446 = vweird.f32 %v2440
        %vm2447 = vmor %vm2445, %vm2446
        %v2448 = vsel %vm2447, %v2440, %v2444
        %v2449 = vand.u32 2147483647, %v2146
        %vm2450 = vcmp.eq.f32.partialorder %v2449, 8.507059e+37
        %v2451 = vand.u32 %v2146, 2147483648
        %v2452 = vor.u32 1.1754944e-38, %v2451
        %v2453 = vsel %vm2450, %v2452, %v2448
        %v2454 = vmul.f32 1.0, %v2453
        %v2455 = vrcp.pop %v2147
        %v2456 = vmul.f32 %v2147, %v2455
        %v2457 = vsub.f32 1.0, %v2456
        %v2458 = vmul.f32 %v2455, %v2457
        %v2459 = vadd.f32 %v2455, %v2458
        %vm2460 = vweird.f32 %v2147
        %vm2461 = vweird.f32 %v2455
        %vm2462 = vmor %vm2460, %vm2461
        %v2463 = vsel %vm2462, %v2455, %v2459
        %v2464 = vand.u32 2147483647, %v2147
        %vm2465 = vcmp.eq.f32.partialorder %v2464, 8.507059e+37
        %v2466 = vand.u32 %v2147, 2147483648
        %v2467 = vor.u32 1.1754944e-38, %v2466
        %v2468 = vsel %vm2465, %v2467, %v2463
        %v2469 = vmul.f32 1.0, %v2468
        %v2470 = vrcp.pop %v2148
        %v2471 = vmul.f32 %v2148, %v2470
        %v2472 = vsub.f32 1.0, %v2471
        %v2473 = vmul.f32 %v2470, %v2472
        %v2474 = vadd.f32 %v2470, %v2473
        %vm2475 = vweird.f32 %v2148
        %vm2476 = vweird.f32 %v2470
        %vm2477 = vmor %vm2475, %vm2476
        %v2478 = vsel %vm2477, %v2470, %v2474
        %v2479 = vand.u32 2147483647, %v2148
        %vm2480 = vcmp.eq.f32.partialorder %v2479, 8.507059e+37
        %v2481 = vand.u32 %v2148, 2147483648
        %v2482 = vor.u32 1.1754944e-38, %v2481
        %v2483 = vsel %vm2480, %v2482, %v2478
        %v2484 = vmul.f32 1.0, %v2483
        %v2485 = vrcp.pop %v2149
        %v2486 = vmul.f32 %v2149, %v2485
        %v2487 = vsub.f32 1.0, %v2486
        %v2488 = vmul.f32 %v2485, %v2487
        %v2489 = vadd.f32 %v2485, %v2488
        %vm2490 = vweird.f32 %v2149
        %vm2491 = vweird.f32 %v2485
        %vm2492 = vmor %vm2490, %vm2491
        %v2493 = vsel %vm2492, %v2485, %v2489
        %v2494 = vand.u32 2147483647, %v2149
        %vm2495 = vcmp.eq.f32.partialorder %v2494, 8.507059e+37
        %v2496 = vand.u32 %v2149, 2147483648
        %v2497 = vor.u32 1.1754944e-38, %v2496
        %v2498 = vsel %vm2495, %v2497, %v2493
        %v2499 = vmul.f32 1.0, %v2498
        %v2500 = vrcp.pop %v2150
        %v2501 = vmul.f32 %v2150, %v2500
        %v2502 = vsub.f32 1.0, %v2501
        %v2503 = vmul.f32 %v2500, %v2502
        %v2504 = vadd.f32 %v2500, %v2503
        %vm2505 = vweird.f32 %v2150
        %vm2506 = vweird.f32 %v2500
        %vm2507 = vmor %vm2505, %vm2506
        %v2508 = vsel %vm2507, %v2500, %v2504
        %v2509 = vand.u32 2147483647, %v2150
        %vm2510 = vcmp.eq.f32.partialorder %v2509, 8.507059e+37
        %v2511 = vand.u32 %v2150, 2147483648
        %v2512 = vor.u32 1.1754944e-38, %v2511
        %v2513 = vsel %vm2510, %v2512, %v2508
        %v2514 = vmul.f32 1.0, %v2513
        %v2515 = vrcp.pop %v2151
        %v2516 = vmul.f32 %v2151, %v2515
        %v2517 = vsub.f32 1.0, %v2516
        %v2518 = vmul.f32 %v2515, %v2517
        %v2519 = vadd.f32 %v2515, %v2518
        %vm2520 = vweird.f32 %v2151
        %vm2521 = vweird.f32 %v2515
        %vm2522 = vmor %vm2520, %vm2521
        %v2523 = vsel %vm2522, %v2515, %v2519
        %v2524 = vand.u32 2147483647, %v2151
        %vm2525 = vcmp.eq.f32.partialorder %v2524, 8.507059e+37
        %v2526 = vand.u32 %v2151, 2147483648
        %v2527 = vor.u32 1.1754944e-38, %v2526
        %v2528 = vsel %vm2525, %v2527, %v2523
        %v2529 = vmul.f32 1.0, %v2528
        %v2530 = vrcp.pop %v2152
        %v2531 = vmul.f32 %v2152, %v2530
        %v2532 = vsub.f32 1.0, %v2531
        %v2533 = vmul.f32 %v2530, %v2532
        %v2534 = vadd.f32 %v2530, %v2533
        %vm2535 = vweird.f32 %v2152
        %vm2536 = vweird.f32 %v2530
        %vm2537 = vmor %vm2535, %vm2536
        %v2538 = vsel %vm2537, %v2530, %v2534
        %v2539 = vand.u32 2147483647, %v2152
        %vm2540 = vcmp.eq.f32.partialorder %v2539, 8.507059e+37
        %v2541 = vand.u32 %v2152, 2147483648
        %v2542 = vor.u32 1.1754944e-38, %v2541
        %v2543 = vsel %vm2540, %v2542, %v2538
        %v2544 = vmul.f32 1.0, %v2543
        %v2545 = vrcp.pop %v2153
        %v2546 = vmul.f32 %v2153, %v2545
        %v2547 = vsub.f32 1.0, %v2546
        %v2548 = vmul.f32 %v2545, %v2547
        %v2549 = vadd.f32 %v2545, %v2548
        %vm2550 = vweird.f32 %v2153
        %vm2551 = vweird.f32 %v2545
        %vm2552 = vmor %vm2550, %vm2551
        %v2553 = vsel %vm2552, %v2545, %v2549
        %v2554 = vand.u32 2147483647, %v2153
        %vm2555 = vcmp.eq.f32.partialorder %v2554, 8.507059e+37
        %v2556 = vand.u32 %v2153, 2147483648
        %v2557 = vor.u32 1.1754944e-38, %v2556
        %v2558 = vsel %vm2555, %v2557, %v2553
        %v2559 = vmul.f32 1.0, %v2558
        %v2560 = vrcp.pop %v2154
        %v2561 = vmul.f32 %v2154, %v2560
        %v2562 = vsub.f32 1.0, %v2561
        %v2563 = vmul.f32 %v2560, %v2562
        %v2564 = vadd.f32 %v2560, %v2563
        %vm2565 = vweird.f32 %v2154
        %vm2566 = vweird.f32 %v2560
        %vm2567 = vmor %vm2565, %vm2566
        %v2568 = vsel %vm2567, %v2560, %v2564
        %v2569 = vand.u32 2147483647, %v2154
        %vm2570 = vcmp.eq.f32.partialorder %v2569, 8.507059e+37
        %v2571 = vand.u32 %v2154, 2147483648
        %v2572 = vor.u32 1.1754944e-38, %v2571
        %v2573 = vsel %vm2570, %v2572, %v2568
        %v2574 = vmul.f32 1.0, %v2573
        %2575 = vst [vmem:[%s544] sm:$0xff] %v2169
        %2576 = vst [vmem:[%s544 + $0x8] sm:$0xff] %v2184
        %2577 = vst [vmem:[%s544 + $0x10] sm:$0xff] %v2199
        %2578 = vst [vmem:[%s544 + $0x18] sm:$0xff] %v2214
        %2579 = vst [vmem:[%s544 + $0x20] sm:$0xff] %v2229
        %2580 = vst [vmem:[%s544 + $0x28] sm:$0xff] %v2244
        %2581 = vst.msk [vmem:[%s544 + $0x30] sm:$0xff] %vm1036, %v2259
        %2582 = vst [vmem:[%s544 + $0x38] sm:$0xff] %v2274
        %2583 = vst [vmem:[%s544 + $0x40] sm:$0xff] %v2289
        %2584 = vst [vmem:[%s544 + $0x48] sm:$0xff] %v2304
        %2585 = vst [vmem:[%s544 + $0x50] sm:$0xff] %v2319
        %2586 = vst [vmem:[%s544 + $0x58] sm:$0xff] %v2334
        %2587 = vst [vmem:[%s544 + $0x60] sm:$0xff] %v2349
        %2588 = vst.msk [vmem:[%s544 + $0x68] sm:$0xff] %vm1036, %v2364
        %2589 = vst [vmem:[%s544 + $0x70] sm:$0xff] %v2379
        %2590 = vst [vmem:[%s544 + $0x78] sm:$0xff] %v2394
        %2591 = vst [vmem:[%s544 + $0x80] sm:$0xff] %v2409
        %2592 = vst [vmem:[%s544 + $0x88] sm:$0xff] %v2424
        %2593 = vst [vmem:[%s544 + $0x90] sm:$0xff] %v2439
        %2594 = vst [vmem:[%s544 + $0x98] sm:$0xff] %v2454
        %2595 = vst.msk [vmem:[%s544 + $0xa0] sm:$0xff] %vm1036, %v2469
        %2596 = vst [vmem:[%s544 + $0xa8] sm:$0xff] %v2484
        %2597 = vst [vmem:[%s544 + $0xb0] sm:$0xff] %v2499
        %2598 = vst [vmem:[%s544 + $0xb8] sm:$0xff] %v2514
        %2599 = vst [vmem:[%s544 + $0xc0] sm:$0xff] %v2529
        %2600 = vst [vmem:[%s544 + $0xc8] sm:$0xff] %v2544
        %2601 = vst [vmem:[%s544 + $0xd0] sm:$0xff] %v2559
        %2602 = vst.msk [vmem:[%s544 + $0xd8] sm:$0xff] %vm1036, %v2574
        %s2603 = sand.u32 %s401, 1
        %s2604 = scalar_lea.sflag [#allocation3], %s2603
        %s2605 = sand.u32 %s401, 1
        %s2606 = smul.addr %s2605, 224
        %s2607 = scalar_lea.vmem [#allocation2], %s2606
        // Predicated region
        $region89: #{_forward_impl.1} parent=87 // pred_check
          %p2608 = pneg %p411
        $region90: #{_forward_impl.1} parent=87 // pred_check_branch
          %2610 = sbr.rel (%p2608) target = $region92
        $region91: #{_forward_impl.1} parent=87 // pred_region
          %s2611 = smul.u32 4, %s31
          %2613 = vsyncadd %s2604, 0
          %s2614 = smul.addr %s2611, 7
          %s2615 = smul.addr %s2614, 8
          %s2616 = scalar_lea.hbm %s17, %s2615
          %s2617 = sshll.u32 %s2607, 4
          %s2618 = int_to_ptr.vmem [resolvable:$true] %s2617
          %s2619 = sshll.u32 %s2616, 4
          %s2620 = int_to_ptr.hbm [resolvable:$true] %s2619
          %2625 = dma.vmem_to_hbm [thread:$0]  %s2618, 3584, %s2620, %s2604, 896, 896, 56
        $region92: #{_forward_impl.1} parent=87 // pred_fallthru
          _
      $region88: #{_forward_impl.1} parent=5 // pred_fallthru
        _
      %p2626 = scmp.le.s32.totalorder 2, %s26
      // Predicated region
      $region93: #{_forward_impl.1} parent=5 // pred_check
        %p2627 = pneg %p2626
      $region94: #{_forward_impl.1} parent=5 // pred_check_branch
        %2629 = sbr.rel (%p2627) target = $region96
      $region95: #{_forward_impl.1} parent=5 // pred_region
        %s2630 = ssub.s32 %s26, 2
        // Predicated region
        $region97: #{_forward_impl.1} parent=95 // pred_check
          %p2631 = pneg %p417
        $region98: #{_forward_impl.1} parent=95 // pred_check_branch
          %2633 = sbr.rel (%p2631) target = $region100
        $region99: #{_forward_impl.1} parent=95 // pred_region
          %s2634 = sand.u32 %s402, 1
          %s2635 = scalar_lea.sflag [#allocation3], %s2634
          %s2636 = sand.u32 %s402, 1
          %s2637 = smul.addr %s2636, 224
          %s2638 = scalar_lea.vmem [#allocation2], %s2637
          %2640 = dma.done %s2635, 3584
        $region100: #{_forward_impl.1} parent=95 // pred_fallthru
          _
      $region96: #{_forward_impl.1} parent=5 // pred_fallthru
        _
    $region6: #{_forward_impl.1} parent=1 // loop_footer
      %s30 = sadd.s32 1, %s26
    $region7: #{_forward_impl.1} parent=1 // loop_footer_branch
      %25 = sbr.rel target = $region3
    $region8: #{_forward_impl.1} parent=1 // loop_exit
      _
    %2641 = vsyncpa [#allocation3], 1
    %s2642 = scalar_lea.sflag [#allocation3], 1
    %2643 = vsyncpa %s2642, 1

</llo_original>
